<compile_context>
chip_gen: v6e
topology: v6e:2x2x1
jax: 0.10.0
libtpu: 0.0.40
codegen_flags: <defaults>
</compile_context>

<pallas_src>
import numpy as np
import jax
import jax.numpy as jnp
from jax.experimental import pallas as pl
from jax.experimental.pallas import tpu as pltpu

NODE_BLK_STREAM = 1280   # v7x: grid=4 -> even split across the 2 TensorCores
NODE_BLK_GEN = 2560      # v5e/v6e: single TC -> fewer (2) grid steps


def _leaky(x):
    return jnp.where(x >= 0, x, 0.2 * x)


def _is_v7x():
    try:
        kind = jax.devices()[0].device_kind.lower()
    except Exception:
        return False
    return ("v7" in kind) or ("7x" in kind) or ("tpu7" in kind)


# --------------------------------------------------------------------------
# Kernel 1 (runs once): MeshUpSample per-channel MLP + LayerNorm + folded wc1,
# element-in-lane layout.
#   xt_ref   : (R, n_e) f32, R = BS*C, row r = b*C + c, lanes = mesh elements
#   p_ref    : (52, R, 1) f32 packed per-channel params, pre-broadcast to rows:
#              rows  0: 4  w1[k,c]          4: 8  b1[k,c]      8:12  b2[k,c]
#                   12:16  ln_gamma[k,c]   16:20  ln_beta[k,c]
#                   20:36  w2t[j,k,c] at 20 + j*4 + k
#                   36:52  w3t[j,k,c] at 36 + j*4 + k
#   wfold_ref: (BS*H, R) bf16 block-diagonal of wc1^T (folds contracter Lin 1)
#   hf_ref   : (BS*H, 4*n_e) bf16, column k*n_e + e = corner-k value of elem e
#              already multiplied by wc1^T (per batch block)
# --------------------------------------------------------------------------
def upsample_fold_kernel(xt_ref, p_ref, wfold_ref, hf_ref):
    x = xt_ref[...]                      # (R, n_e) f32
    n_e = x.shape[1]

    def w(i):
        return p_ref[i]                  # (R, 1), broadcasts along element lanes

    # Linear(1->4) + LeakyReLU
    h1 = [_leaky(w(k) * x + w(4 + k)) for k in range(4)]
    # Linear(4->4) + LeakyReLU
    h2 = []
    for k in range(4):
        z = w(8 + k) + h1[0] * w(20 + k)
        for j in range(1, 4):
            z = z + h1[j] * w(20 + j * 4 + k)
        h2.append(_leaky(z))
    # Linear(4->4, no bias)
    h3 = []
    for k in range(4):
        z = h2[0] * w(36 + k)
        for j in range(1, 4):
            z = z + h2[j] * w(36 + j * 4 + k)
        h3.append(z)
    # LayerNorm over the size-4 corner axis (biased variance, eps = 1e-5)
    mu = (h3[0] + h3[1] + h3[2] + h3[3]) * 0.25
    var = ((h3[0] - mu) ** 2 + (h3[1] - mu) ** 2 +
           (h3[2] - mu) ** 2 + (h3[3] - mu) ** 2) * 0.25
    inv = jax.lax.rsqrt(var + 1e-5)
    y = [(h3[k] - mu) * inv * w(12 + k) + w(16 + k) for k in range(4)]

    # corner-major (R, 4*n_e) slab, then fold contracter Linear(C->H) via one
    # block-diagonal bf16 matmul (index_add_ is linear, so the fold commutes)
    y_all = jnp.concatenate(y, axis=1).astype(jnp.bfloat16)       # (R, 4*n_e)
    hf_ref[...] = jnp.dot(wfold_ref[...], y_all,
                          preferred_element_type=jnp.float32).astype(hf_ref.dtype)


# --------------------------------------------------------------------------
# Kernel 2a (v7x path): fused scatter-add + contracter with a STREAMED
# precomputed one-hot mask, node-in-lane layout.
#   mask_ref : (4*n_e, nb) bf16 one-hot scatter block (precomputed in wrapper)
#   h_ref    : (BS*H, 4*n_e) bf16 folded corner values from kernel 1
#   b1_ref   : (BS*H, 1) f32   tiled bc1 (bias of folded Linear(C->H))
#   w2_ref   : (BS*H, BS*H) bf16 block-diagonal of wc2^T
#   b2_ref   : (BS*H, 1) f32   tiled bc2
#   w3_ref   : (BS*H, BS*H) bf16 block-diagonal of wc3^T
#   out_ref  : (BS*H, nb) f32  output block, nodes on the lane axis
# --------------------------------------------------------------------------
def scatter_contract_streamed_kernel(mask_ref, h_ref, b1_ref, w2_ref, b2_ref,
                                     w3_ref, out_ref):
    # index_add_ as a single lane-dense bf16 matmul
    feat = jnp.dot(h_ref[...], mask_ref[...],
                   preferred_element_type=jnp.float32)            # (BS*H, nb)
    h1 = _leaky(feat + b1_ref[...])                               # f32 elementwise
    h2 = _leaky(jnp.dot(w2_ref[...], h1.astype(jnp.bfloat16),
                        preferred_element_type=jnp.float32) + b2_ref[...])
    out_ref[...] = jnp.dot(w3_ref[...], h2.astype(jnp.bfloat16),
                           preferred_element_type=jnp.float32)


# --------------------------------------------------------------------------
# Kernel 2b (v5e/v6e path): same fused scatter+contracter, but the one-hot
# mask is generated in-kernel.  The grid-invariant local-node iota is
# materialized once into a VMEM scratch (single TC, sequential grid).
#   conn_ref : (4*n_e, 1) int32, row k*n_e + e = elem_conn[e, k]
#   iota_ref : (4*n_e, nb) int32 VMEM scratch, filled at pid==0
# --------------------------------------------------------------------------
def scatter_contract_gen_kernel(conn_ref, h_ref, b1_ref, w2_ref, b2_ref,
                                w3_ref, out_ref, iota_ref):
    K, nb = iota_ref.shape

    @pl.when(pl.program_id(0) == 0)
    def _():
        iota_ref[...] = jax.lax.broadcasted_iota(jnp.int32, (K, nb), 1)

    base = pl.program_id(0) * nb
    local = conn_ref[...] - base                                  # (K, 1) i32
    mask = (iota_ref[...] == local).astype(jnp.bfloat16)          # (K, nb)
    feat = jnp.dot(h_ref[...], mask, preferred_element_type=jnp.float32)
    h1 = _leaky(feat + b1_ref[...])
    h2 = _leaky(jnp.dot(w2_ref[...], h1.astype(jnp.bfloat16),
                        preferred_element_type=jnp.float32) + b2_ref[...])
    out_ref[...] = jnp.dot(w3_ref[...], h2.astype(jnp.bfloat16),
                           preferred_element_type=jnp.float32)


# --------------------------------------------------------------------------
# Wrapper
# --------------------------------------------------------------------------
def decoder_forward(x, elem_conn, params, num_nodes=4981):
    """x: (BS, n_e, C) float32, elem_conn: (n_e, 4) int32 -> (BS*num_nodes, H)."""
    BS, n_e, C = x.shape
    H = params["wc1"].shape[1]
    R = BS * C
    K = 4 * n_e
    assert (BS * C) % 8 == 0 and (BS * H) % 8 == 0, "need 8-aligned sublane dims"

    use_streamed = _is_v7x()
    node_blk = NODE_BLK_STREAM if use_streamed else NODE_BLK_GEN
    nn_pad = pl.cdiv(num_nodes, node_blk) * node_blk

    # --- layout plumbing (tiny XLA ops) ---
    # element-in-lane input for the per-channel MLP: row r = b*C + c
    xt = jnp.transpose(x.astype(jnp.float32), (0, 2, 1)).reshape(R, n_e)

    # pack the 7 per-channel parameter tensors into one slab pre-broadcast to rows
    def tile_rows(p):                         # (..., C) -> (rows, R), col = b*C + c
        p2 = p.reshape(-1, C)
        return jnp.tile(p2, (1, BS))

    slab = jnp.concatenate(
        [tile_rows(params["w1"]), tile_rows(params["b1"]), tile_rows(params["b2"]),
         tile_rows(params["ln_g"]), tile_rows(params["ln_b"]),
         tile_rows(params["w2t"]), tile_rows(params["w3t"])], axis=0)[:, :, None]
    # slab: (52, R, 1)

    # block-diagonal (per-batch) transposed contracter weights, bf16 operands
    eye_bs = jnp.eye(BS, dtype=jnp.float32)
    wfold = jnp.kron(eye_bs, params["wc1"].T).astype(jnp.bfloat16)   # (BS*H, BS*C)
    w2bd = jnp.kron(eye_bs, params["wc2"].T).astype(jnp.bfloat16)    # (BS*H, BS*H)
    w3bd = jnp.kron(eye_bs, params["wc3"].T).astype(jnp.bfloat16)    # (BS*H, BS*H)
    b1f = jnp.tile(params["bc1"].T, (BS, 1)).astype(jnp.float32)     # (BS*H, 1)
    b2f = jnp.tile(params["bc2"].T, (BS, 1)).astype(jnp.float32)     # (BS*H, 1)

    # --- kernel 1: per-element MLP + folded wc1 (runs once, out of node grid) ---
    h_fold = pl.pallas_call(
        upsample_fold_kernel,
        out_shape=jax.ShapeDtypeStruct((BS * H, K), jnp.bfloat16),
        grid=(1,),
        in_specs=[
            pl.BlockSpec((R, n_e), lambda i: (0, 0)),
            pl.BlockSpec((52, R, 1), lambda i: (0, 0, 0)),
            pl.BlockSpec((BS * H, R), lambda i: (0, 0)),
        ],
        out_specs=pl.BlockSpec((BS * H, K), lambda i: (0, 0)),
        compiler_params=pltpu.CompilerParams(dimension_semantics=("arbitrary",)),
    )(xt, slab, wfold)

    # corner-major flattened connectivity; NOTE: values must be < num_nodes —
    # out-of-range indices would silently land in the padded node range
    # (torch.index_add_ would raise instead).
    conn_flat = jnp.asarray(elem_conn, jnp.int32).T.reshape(K)

    common_in = (h_fold, b1f, w2bd, b2f, w3bd)
    common_specs = [
        pl.BlockSpec((BS * H, K), lambda n: (0, 0)),
        pl.BlockSpec((BS * H, 1), lambda n: (0, 0)),
        pl.BlockSpec((BS * H, BS * H), lambda n: (0, 0)),
        pl.BlockSpec((BS * H, 1), lambda n: (0, 0)),
        pl.BlockSpec((BS * H, BS * H), lambda n: (0, 0)),
    ]

    # --- kernel 2: fused scatter-add + contracter over node blocks ---
    if use_streamed:
        # v7x: precompute the bf16 one-hot scatter matrix once and stream it;
        # kernel becomes a clean MXU + DMA kernel, even grid split across 2 TCs.
        mask = (conn_flat[:, None] ==
                jnp.arange(nn_pad, dtype=jnp.int32)[None, :]).astype(jnp.bfloat16)
        out_t = pl.pallas_call(
            scatter_contract_streamed_kernel,
            out_shape=jax.ShapeDtypeStruct((BS * H, nn_pad), jnp.float32),
            grid=(nn_pad // node_blk,),
            in_specs=[pl.BlockSpec((K, node_blk), lambda n: (0, n))] + common_specs,
            out_specs=pl.BlockSpec((BS * H, node_blk), lambda n: (0, n)),
            compiler_params=pltpu.CompilerParams(
                dimension_semantics=("parallel",),
                vmem_limit_bytes=48 * 1024 * 1024),
        )(mask, *common_in)
    else:
        # v5e/v6e: generate the mask in-kernel (cheaper than streaming 10 MB at
        # this HBM bandwidth); grid-invariant iota cached in VMEM scratch.
        conn_col = conn_flat.reshape(K, 1)
        out_t = pl.pallas_call(
            scatter_contract_gen_kernel,
            out_shape=jax.ShapeDtypeStruct((BS * H, nn_pad), jnp.float32),
            grid=(nn_pad // node_blk,),
            in_specs=[pl.BlockSpec((K, 1), lambda n: (0, 0))] + common_specs,
            out_specs=pl.BlockSpec((BS * H, node_blk), lambda n: (0, n)),
            scratch_shapes=[pltpu.VMEM((K, node_blk), jnp.int32)],
            compiler_params=pltpu.CompilerParams(
                dimension_semantics=("arbitrary",),
                vmem_limit_bytes=64 * 1024 * 1024),
        )(conn_col, *common_in)

    # undo the node-in-lane transpose, drop node padding, flatten like torch
    y = jnp.transpose(out_t.reshape(BS, H, nn_pad), (0, 2, 1))[:, :num_nodes, :]
    return y.reshape(BS * num_nodes, H)


# --------------------------------------------------------------------------
# Deterministic parameter init (shapes implied by the module __init__)
# --------------------------------------------------------------------------
def init_params(key, C, H):
    ks = jax.random.split(key, 12)
    s = 0.3
    p = {}
    # per-channel MLP of MeshUpSample (Create_Parallel(C, 1, 4)), stored [k, c]
    p["w1"] = s * jax.random.normal(ks[0], (4, C), jnp.float32)      # Linear(1,4).weight
    p["b1"] = s * jax.random.normal(ks[1], (4, C), jnp.float32)
    p["w2t"] = s * jax.random.normal(ks[2], (4, 4, C), jnp.float32)  # Linear(4,4).weight.T
    p["b2"] = s * jax.random.normal(ks[3], (4, C), jnp.float32)
    p["w3t"] = s * jax.random.normal(ks[4], (4, 4, C), jnp.float32)  # Linear(4,4,bias=False)
    p["ln_g"] = 1.0 + 0.1 * jax.random.normal(ks[5], (4, C), jnp.float32)
    p["ln_b"] = 0.1 * jax.random.normal(ks[6], (4, C), jnp.float32)
    # contracter (weights stored transposed: [in, out])
    p["wc1"] = s * jax.random.normal(ks[7], (C, H), jnp.float32)
    p["bc1"] = s * jax.random.normal(ks[8], (1, H), jnp.float32)
    p["wc2"] = s * jax.random.normal(ks[9], (H, H), jnp.float32)
    p["bc2"] = s * jax.random.normal(ks[10], (1, H), jnp.float32)
    p["wc3"] = s * jax.random.normal(ks[11], (H, H), jnp.float32)
    return p


# --------------------------------------------------------------------------
# Pure-numpy (float64) reference of the PyTorch forward pass
# --------------------------------------------------------------------------
def reference_forward(x, elem_conn, params, num_nodes):
    P = {k: np.asarray(v, np.float64) for k, v in params.items()}
    x = np.asarray(x, np.float64)
    conn = np.asarray(elem_conn)
    BS, n_e, C = x.shape

    def leaky(v):
        return np.where(v >= 0, v, 0.2 * v)

    # per-channel MLP, layout (b, e, k, c) like PyTorch's (bs, n_e, 4, C)
    h1 = leaky(x[:, :, None, :] * P["w1"][None, None] + P["b1"][None, None])
    h2 = leaky(np.einsum("bejc,jkc->bekc", h1, P["w2t"]) + P["b2"][None, None])
    h3 = np.einsum("bejc,jkc->bekc", h2, P["w3t"])
    mu = h3.mean(axis=2, keepdims=True)
    var = ((h3 - mu) ** 2).mean(axis=2, keepdims=True)
    y = (h3 - mu) / np.sqrt(var + 1e-5) * P["ln_g"][None, None] + P["ln_b"][None, None]

    out = np.zeros((BS, num_nodes, C), np.float64)
    for i in range(4):
        np.add.at(out, (slice(None), conn[:, i]), y[:, :, i, :])   # index_add_

    flat = out.reshape(-1, C)
    h = leaky(flat @ P["wc1"] + P["bc1"])
    h = leaky(h @ P["wc2"] + P["bc2"])
    return h @ P["wc3"]


if __name__ == "__main__":
    key = jax.random.PRNGKey(0)
    BS, n_e, C, H = 2, 256, 4, 8          # batch, mesh elements, in_channel, out_channel
    NUM_NODES = 4981                      # MeshUpSample default num_nodes

    k_x, k_conn, k_p = jax.random.split(key, 3)
    x = jax.random.normal(k_x, (BS, n_e, C), jnp.float32)
    elem_conn = jax.random.randint(k_conn, (n_e, 4), 0, NUM_NODES, dtype=jnp.int32)
    params = init_params(k_p, C, H)

    y = decoder_forward(x, elem_conn, params, num_nodes=NUM_NODES)
    y = jax.block_until_ready(y)

    assert y.shape == (BS * NUM_NODES, H), y.shape
    ref = reference_forward(np.asarray(x), np.asarray(elem_conn), params, NUM_NODES)
    np.testing.assert_allclose(np.asarray(y), ref, rtol=2e-2, atol=2e-2)
    print("KERNEL_OK")
</pallas_src>

<mosaic_0001>
module attributes {stable_mosaic.version = 11 : i64} {
  func.func @upsample_fold_kernel(%arg0: i32, %arg1: memref<8x256xf32, #tpu.memory_space<vmem>>, %arg2: memref<52x8x1xf32, #tpu.memory_space<vmem>>, %arg3: memref<16x8xbf16, #tpu.memory_space<vmem>>, %arg4: memref<16x1024xbf16, #tpu.memory_space<vmem>>) attributes {dimension_semantics = [#tpu.dimension_semantics<arbitrary>], iteration_bounds = array<i64: 1>, scalar_prefetch = 0 : i64, scratch_operands = 0 : i64, tpu.core_type = #tpu.core_type<tc>, window_params = [{pipeline_mode = #tpu.pipeline_mode<synchronous>, transform_indices = @transform_0, window_bounds = array<i64: 8, 256>}, {pipeline_mode = #tpu.pipeline_mode<synchronous>, transform_indices = @transform_1, window_bounds = array<i64: 52, 8, 1>}, {pipeline_mode = #tpu.pipeline_mode<synchronous>, transform_indices = @transform_2, window_bounds = array<i64: 16, 8>}, {pipeline_mode = #tpu.pipeline_mode<synchronous>, transform_indices = @transform_3, window_bounds = array<i64: 16, 1024>}]} {
    %c0 = arith.constant 0 : index
    %c0_0 = arith.constant 0 : index
    %0 = vector.load %arg1[%c0, %c0_0] : memref<8x256xf32, #tpu.memory_space<vmem>>, vector<8x256xf32>
    %c0_1 = arith.constant 0 : index
    %c0_2 = arith.constant 0 : index
    %c0_3 = arith.constant 0 : index
    %1 = vector.load %arg2[%c0_1, %c0_2, %c0_3] : memref<52x8x1xf32, #tpu.memory_space<vmem>>, vector<1x8x1xf32>
    %2 = vector.shape_cast %1 : vector<1x8x1xf32> to vector<8x1xf32>
    %3 = vector.broadcast %2 : vector<8x1xf32> to vector<8x256xf32>
    %4 = arith.mulf %3, %0 : vector<8x256xf32>
    %c4 = arith.constant 4 : index
    %c0_4 = arith.constant 0 : index
    %c0_5 = arith.constant 0 : index
    %5 = vector.load %arg2[%c4, %c0_4, %c0_5] : memref<52x8x1xf32, #tpu.memory_space<vmem>>, vector<1x8x1xf32>
    %6 = vector.shape_cast %5 : vector<1x8x1xf32> to vector<8x1xf32>
    %7 = vector.broadcast %6 : vector<8x1xf32> to vector<8x256xf32>
    %8 = arith.addf %4, %7 : vector<8x256xf32>
    %cst = arith.constant 0.000000e+00 : f32
    %9 = vector.broadcast %cst : f32 to vector<8x256xf32>
    %10 = arith.cmpf oge, %8, %9 : vector<8x256xf32>
    %cst_6 = arith.constant 2.000000e-01 : f32
    %11 = vector.broadcast %cst_6 : f32 to vector<8x256xf32>
    %12 = arith.mulf %11, %8 : vector<8x256xf32>
    %13 = arith.select %10, %8, %12 : vector<8x256xi1>, vector<8x256xf32>
    %c1 = arith.constant 1 : index
    %c0_7 = arith.constant 0 : index
    %c0_8 = arith.constant 0 : index
    %14 = vector.load %arg2[%c1, %c0_7, %c0_8] : memref<52x8x1xf32, #tpu.memory_space<vmem>>, vector<1x8x1xf32>
    %15 = vector.shape_cast %14 : vector<1x8x1xf32> to vector<8x1xf32>
    %16 = vector.broadcast %15 : vector<8x1xf32> to vector<8x256xf32>
    %17 = arith.mulf %16, %0 : vector<8x256xf32>
    %c5 = arith.constant 5 : index
    %c0_9 = arith.constant 0 : index
    %c0_10 = arith.constant 0 : index
    %18 = vector.load %arg2[%c5, %c0_9, %c0_10] : memref<52x8x1xf32, #tpu.memory_space<vmem>>, vector<1x8x1xf32>
    %19 = vector.shape_cast %18 : vector<1x8x1xf32> to vector<8x1xf32>
    %20 = vector.broadcast %19 : vector<8x1xf32> to vector<8x256xf32>
    %21 = arith.addf %17, %20 : vector<8x256xf32>
    %cst_11 = arith.constant 0.000000e+00 : f32
    %22 = vector.broadcast %cst_11 : f32 to vector<8x256xf32>
    %23 = arith.cmpf oge, %21, %22 : vector<8x256xf32>
    %cst_12 = arith.constant 2.000000e-01 : f32
    %24 = vector.broadcast %cst_12 : f32 to vector<8x256xf32>
    %25 = arith.mulf %24, %21 : vector<8x256xf32>
    %26 = arith.select %23, %21, %25 : vector<8x256xi1>, vector<8x256xf32>
    %c2 = arith.constant 2 : index
    %c0_13 = arith.constant 0 : index
    %c0_14 = arith.constant 0 : index
    %27 = vector.load %arg2[%c2, %c0_13, %c0_14] : memref<52x8x1xf32, #tpu.memory_space<vmem>>, vector<1x8x1xf32>
    %28 = vector.shape_cast %27 : vector<1x8x1xf32> to vector<8x1xf32>
    %29 = vector.broadcast %28 : vector<8x1xf32> to vector<8x256xf32>
    %30 = arith.mulf %29, %0 : vector<8x256xf32>
    %c6 = arith.constant 6 : index
    %c0_15 = arith.constant 0 : index
    %c0_16 = arith.constant 0 : index
    %31 = vector.load %arg2[%c6, %c0_15, %c0_16] : memref<52x8x1xf32, #tpu.memory_space<vmem>>, vector<1x8x1xf32>
    %32 = vector.shape_cast %31 : vector<1x8x1xf32> to vector<8x1xf32>
    %33 = vector.broadcast %32 : vector<8x1xf32> to vector<8x256xf32>
    %34 = arith.addf %30, %33 : vector<8x256xf32>
    %cst_17 = arith.constant 0.000000e+00 : f32
    %35 = vector.broadcast %cst_17 : f32 to vector<8x256xf32>
    %36 = arith.cmpf oge, %34, %35 : vector<8x256xf32>
    %cst_18 = arith.constant 2.000000e-01 : f32
    %37 = vector.broadcast %cst_18 : f32 to vector<8x256xf32>
    %38 = arith.mulf %37, %34 : vector<8x256xf32>
    %39 = arith.select %36, %34, %38 : vector<8x256xi1>, vector<8x256xf32>
    %c3 = arith.constant 3 : index
    %c0_19 = arith.constant 0 : index
    %c0_20 = arith.constant 0 : index
    %40 = vector.load %arg2[%c3, %c0_19, %c0_20] : memref<52x8x1xf32, #tpu.memory_space<vmem>>, vector<1x8x1xf32>
    %41 = vector.shape_cast %40 : vector<1x8x1xf32> to vector<8x1xf32>
    %42 = vector.broadcast %41 : vector<8x1xf32> to vector<8x256xf32>
    %43 = arith.mulf %42, %0 : vector<8x256xf32>
    %c7 = arith.constant 7 : index
    %c0_21 = arith.constant 0 : index
    %c0_22 = arith.constant 0 : index
    %44 = vector.load %arg2[%c7, %c0_21, %c0_22] : memref<52x8x1xf32, #tpu.memory_space<vmem>>, vector<1x8x1xf32>
    %45 = vector.shape_cast %44 : vector<1x8x1xf32> to vector<8x1xf32>
    %46 = vector.broadcast %45 : vector<8x1xf32> to vector<8x256xf32>
    %47 = arith.addf %43, %46 : vector<8x256xf32>
    %cst_23 = arith.constant 0.000000e+00 : f32
    %48 = vector.broadcast %cst_23 : f32 to vector<8x256xf32>
    %49 = arith.cmpf oge, %47, %48 : vector<8x256xf32>
    %cst_24 = arith.constant 2.000000e-01 : f32
    %50 = vector.broadcast %cst_24 : f32 to vector<8x256xf32>
    %51 = arith.mulf %50, %47 : vector<8x256xf32>
    %52 = arith.select %49, %47, %51 : vector<8x256xi1>, vector<8x256xf32>
    %c8 = arith.constant 8 : index
    %c0_25 = arith.constant 0 : index
    %c0_26 = arith.constant 0 : index
    %53 = vector.load %arg2[%c8, %c0_25, %c0_26] : memref<52x8x1xf32, #tpu.memory_space<vmem>>, vector<1x8x1xf32>
    %54 = vector.shape_cast %53 : vector<1x8x1xf32> to vector<8x1xf32>
    %c20 = arith.constant 20 : index
    %c0_27 = arith.constant 0 : index
    %c0_28 = arith.constant 0 : index
    %55 = vector.load %arg2[%c20, %c0_27, %c0_28] : memref<52x8x1xf32, #tpu.memory_space<vmem>>, vector<1x8x1xf32>
    %56 = vector.shape_cast %55 : vector<1x8x1xf32> to vector<8x1xf32>
    %57 = vector.broadcast %56 : vector<8x1xf32> to vector<8x256xf32>
    %58 = arith.mulf %13, %57 : vector<8x256xf32>
    %59 = vector.broadcast %54 : vector<8x1xf32> to vector<8x256xf32>
    %60 = arith.addf %59, %58 : vector<8x256xf32>
    %c24 = arith.constant 24 : index
    %c0_29 = arith.constant 0 : index
    %c0_30 = arith.constant 0 : index
    %61 = vector.load %arg2[%c24, %c0_29, %c0_30] : memref<52x8x1xf32, #tpu.memory_space<vmem>>, vector<1x8x1xf32>
    %62 = vector.shape_cast %61 : vector<1x8x1xf32> to vector<8x1xf32>
    %63 = vector.broadcast %62 : vector<8x1xf32> to vector<8x256xf32>
    %64 = arith.mulf %26, %63 : vector<8x256xf32>
    %65 = arith.addf %60, %64 : vector<8x256xf32>
    %c28 = arith.constant 28 : index
    %c0_31 = arith.constant 0 : index
    %c0_32 = arith.constant 0 : index
    %66 = vector.load %arg2[%c28, %c0_31, %c0_32] : memref<52x8x1xf32, #tpu.memory_space<vmem>>, vector<1x8x1xf32>
    %67 = vector.shape_cast %66 : vector<1x8x1xf32> to vector<8x1xf32>
    %68 = vector.broadcast %67 : vector<8x1xf32> to vector<8x256xf32>
    %69 = arith.mulf %39, %68 : vector<8x256xf32>
    %70 = arith.addf %65, %69 : vector<8x256xf32>
    %c32 = arith.constant 32 : index
    %c0_33 = arith.constant 0 : index
    %c0_34 = arith.constant 0 : index
    %71 = vector.load %arg2[%c32, %c0_33, %c0_34] : memref<52x8x1xf32, #tpu.memory_space<vmem>>, vector<1x8x1xf32>
    %72 = vector.shape_cast %71 : vector<1x8x1xf32> to vector<8x1xf32>
    %73 = vector.broadcast %72 : vector<8x1xf32> to vector<8x256xf32>
    %74 = arith.mulf %52, %73 : vector<8x256xf32>
    %75 = arith.addf %70, %74 : vector<8x256xf32>
    %cst_35 = arith.constant 0.000000e+00 : f32
    %76 = vector.broadcast %cst_35 : f32 to vector<8x256xf32>
    %77 = arith.cmpf oge, %75, %76 : vector<8x256xf32>
    %cst_36 = arith.constant 2.000000e-01 : f32
    %78 = vector.broadcast %cst_36 : f32 to vector<8x256xf32>
    %79 = arith.mulf %78, %75 : vector<8x256xf32>
    %80 = arith.select %77, %75, %79 : vector<8x256xi1>, vector<8x256xf32>
    %c9 = arith.constant 9 : index
    %c0_37 = arith.constant 0 : index
    %c0_38 = arith.constant 0 : index
    %81 = vector.load %arg2[%c9, %c0_37, %c0_38] : memref<52x8x1xf32, #tpu.memory_space<vmem>>, vector<1x8x1xf32>
    %82 = vector.shape_cast %81 : vector<1x8x1xf32> to vector<8x1xf32>
    %c21 = arith.constant 21 : index
    %c0_39 = arith.constant 0 : index
    %c0_40 = arith.constant 0 : index
    %83 = vector.load %arg2[%c21, %c0_39, %c0_40] : memref<52x8x1xf32, #tpu.memory_space<vmem>>, vector<1x8x1xf32>
    %84 = vector.shape_cast %83 : vector<1x8x1xf32> to vector<8x1xf32>
    %85 = vector.broadcast %84 : vector<8x1xf32> to vector<8x256xf32>
    %86 = arith.mulf %13, %85 : vector<8x256xf32>
    %87 = vector.broadcast %82 : vector<8x1xf32> to vector<8x256xf32>
    %88 = arith.addf %87, %86 : vector<8x256xf32>
    %c25 = arith.constant 25 : index
    %c0_41 = arith.constant 0 : index
    %c0_42 = arith.constant 0 : index
    %89 = vector.load %arg2[%c25, %c0_41, %c0_42] : memref<52x8x1xf32, #tpu.memory_space<vmem>>, vector<1x8x1xf32>
    %90 = vector.shape_cast %89 : vector<1x8x1xf32> to vector<8x1xf32>
    %91 = vector.broadcast %90 : vector<8x1xf32> to vector<8x256xf32>
    %92 = arith.mulf %26, %91 : vector<8x256xf32>
    %93 = arith.addf %88, %92 : vector<8x256xf32>
    %c29 = arith.constant 29 : index
    %c0_43 = arith.constant 0 : index
    %c0_44 = arith.constant 0 : index
    %94 = vector.load %arg2[%c29, %c0_43, %c0_44] : memref<52x8x1xf32, #tpu.memory_space<vmem>>, vector<1x8x1xf32>
    %95 = vector.shape_cast %94 : vector<1x8x1xf32> to vector<8x1xf32>
    %96 = vector.broadcast %95 : vector<8x1xf32> to vector<8x256xf32>
    %97 = arith.mulf %39, %96 : vector<8x256xf32>
    %98 = arith.addf %93, %97 : vector<8x256xf32>
    %c33 = arith.constant 33 : index
    %c0_45 = arith.constant 0 : index
    %c0_46 = arith.constant 0 : index
    %99 = vector.load %arg2[%c33, %c0_45, %c0_46] : memref<52x8x1xf32, #tpu.memory_space<vmem>>, vector<1x8x1xf32>
    %100 = vector.shape_cast %99 : vector<1x8x1xf32> to vector<8x1xf32>
    %101 = vector.broadcast %100 : vector<8x1xf32> to vector<8x256xf32>
    %102 = arith.mulf %52, %101 : vector<8x256xf32>
    %103 = arith.addf %98, %102 : vector<8x256xf32>
    %cst_47 = arith.constant 0.000000e+00 : f32
    %104 = vector.broadcast %cst_47 : f32 to vector<8x256xf32>
    %105 = arith.cmpf oge, %103, %104 : vector<8x256xf32>
    %cst_48 = arith.constant 2.000000e-01 : f32
    %106 = vector.broadcast %cst_48 : f32 to vector<8x256xf32>
    %107 = arith.mulf %106, %103 : vector<8x256xf32>
    %108 = arith.select %105, %103, %107 : vector<8x256xi1>, vector<8x256xf32>
    %c10 = arith.constant 10 : index
    %c0_49 = arith.constant 0 : index
    %c0_50 = arith.constant 0 : index
    %109 = vector.load %arg2[%c10, %c0_49, %c0_50] : memref<52x8x1xf32, #tpu.memory_space<vmem>>, vector<1x8x1xf32>
    %110 = vector.shape_cast %109 : vector<1x8x1xf32> to vector<8x1xf32>
    %c22 = arith.constant 22 : index
    %c0_51 = arith.constant 0 : index
    %c0_52 = arith.constant 0 : index
    %111 = vector.load %arg2[%c22, %c0_51, %c0_52] : memref<52x8x1xf32, #tpu.memory_space<vmem>>, vector<1x8x1xf32>
    %112 = vector.shape_cast %111 : vector<1x8x1xf32> to vector<8x1xf32>
    %113 = vector.broadcast %112 : vector<8x1xf32> to vector<8x256xf32>
    %114 = arith.mulf %13, %113 : vector<8x256xf32>
    %115 = vector.broadcast %110 : vector<8x1xf32> to vector<8x256xf32>
    %116 = arith.addf %115, %114 : vector<8x256xf32>
    %c26 = arith.constant 26 : index
    %c0_53 = arith.constant 0 : index
    %c0_54 = arith.constant 0 : index
    %117 = vector.load %arg2[%c26, %c0_53, %c0_54] : memref<52x8x1xf32, #tpu.memory_space<vmem>>, vector<1x8x1xf32>
    %118 = vector.shape_cast %117 : vector<1x8x1xf32> to vector<8x1xf32>
    %119 = vector.broadcast %118 : vector<8x1xf32> to vector<8x256xf32>
    %120 = arith.mulf %26, %119 : vector<8x256xf32>
    %121 = arith.addf %116, %120 : vector<8x256xf32>
    %c30 = arith.constant 30 : index
    %c0_55 = arith.constant 0 : index
    %c0_56 = arith.constant 0 : index
    %122 = vector.load %arg2[%c30, %c0_55, %c0_56] : memref<52x8x1xf32, #tpu.memory_space<vmem>>, vector<1x8x1xf32>
    %123 = vector.shape_cast %122 : vector<1x8x1xf32> to vector<8x1xf32>
    %124 = vector.broadcast %123 : vector<8x1xf32> to vector<8x256xf32>
    %125 = arith.mulf %39, %124 : vector<8x256xf32>
    %126 = arith.addf %121, %125 : vector<8x256xf32>
    %c34 = arith.constant 34 : index
    %c0_57 = arith.constant 0 : index
    %c0_58 = arith.constant 0 : index
    %127 = vector.load %arg2[%c34, %c0_57, %c0_58] : memref<52x8x1xf32, #tpu.memory_space<vmem>>, vector<1x8x1xf32>
    %128 = vector.shape_cast %127 : vector<1x8x1xf32> to vector<8x1xf32>
    %129 = vector.broadcast %128 : vector<8x1xf32> to vector<8x256xf32>
    %130 = arith.mulf %52, %129 : vector<8x256xf32>
    %131 = arith.addf %126, %130 : vector<8x256xf32>
    %cst_59 = arith.constant 0.000000e+00 : f32
    %132 = vector.broadcast %cst_59 : f32 to vector<8x256xf32>
    %133 = arith.cmpf oge, %131, %132 : vector<8x256xf32>
    %cst_60 = arith.constant 2.000000e-01 : f32
    %134 = vector.broadcast %cst_60 : f32 to vector<8x256xf32>
    %135 = arith.mulf %134, %131 : vector<8x256xf32>
    %136 = arith.select %133, %131, %135 : vector<8x256xi1>, vector<8x256xf32>
    %c11 = arith.constant 11 : index
    %c0_61 = arith.constant 0 : index
    %c0_62 = arith.constant 0 : index
    %137 = vector.load %arg2[%c11, %c0_61, %c0_62] : memref<52x8x1xf32, #tpu.memory_space<vmem>>, vector<1x8x1xf32>
    %138 = vector.shape_cast %137 : vector<1x8x1xf32> to vector<8x1xf32>
    %c23 = arith.constant 23 : index
    %c0_63 = arith.constant 0 : index
    %c0_64 = arith.constant 0 : index
    %139 = vector.load %arg2[%c23, %c0_63, %c0_64] : memref<52x8x1xf32, #tpu.memory_space<vmem>>, vector<1x8x1xf32>
    %140 = vector.shape_cast %139 : vector<1x8x1xf32> to vector<8x1xf32>
    %141 = vector.broadcast %140 : vector<8x1xf32> to vector<8x256xf32>
    %142 = arith.mulf %13, %141 : vector<8x256xf32>
    %143 = vector.broadcast %138 : vector<8x1xf32> to vector<8x256xf32>
    %144 = arith.addf %143, %142 : vector<8x256xf32>
    %c27 = arith.constant 27 : index
    %c0_65 = arith.constant 0 : index
    %c0_66 = arith.constant 0 : index
    %145 = vector.load %arg2[%c27, %c0_65, %c0_66] : memref<52x8x1xf32, #tpu.memory_space<vmem>>, vector<1x8x1xf32>
    %146 = vector.shape_cast %145 : vector<1x8x1xf32> to vector<8x1xf32>
    %147 = vector.broadcast %146 : vector<8x1xf32> to vector<8x256xf32>
    %148 = arith.mulf %26, %147 : vector<8x256xf32>
    %149 = arith.addf %144, %148 : vector<8x256xf32>
    %c31 = arith.constant 31 : index
    %c0_67 = arith.constant 0 : index
    %c0_68 = arith.constant 0 : index
    %150 = vector.load %arg2[%c31, %c0_67, %c0_68] : memref<52x8x1xf32, #tpu.memory_space<vmem>>, vector<1x8x1xf32>
    %151 = vector.shape_cast %150 : vector<1x8x1xf32> to vector<8x1xf32>
    %152 = vector.broadcast %151 : vector<8x1xf32> to vector<8x256xf32>
    %153 = arith.mulf %39, %152 : vector<8x256xf32>
    %154 = arith.addf %149, %153 : vector<8x256xf32>
    %c35 = arith.constant 35 : index
    %c0_69 = arith.constant 0 : index
    %c0_70 = arith.constant 0 : index
    %155 = vector.load %arg2[%c35, %c0_69, %c0_70] : memref<52x8x1xf32, #tpu.memory_space<vmem>>, vector<1x8x1xf32>
    %156 = vector.shape_cast %155 : vector<1x8x1xf32> to vector<8x1xf32>
    %157 = vector.broadcast %156 : vector<8x1xf32> to vector<8x256xf32>
    %158 = arith.mulf %52, %157 : vector<8x256xf32>
    %159 = arith.addf %154, %158 : vector<8x256xf32>
    %cst_71 = arith.constant 0.000000e+00 : f32
    %160 = vector.broadcast %cst_71 : f32 to vector<8x256xf32>
    %161 = arith.cmpf oge, %159, %160 : vector<8x256xf32>
    %cst_72 = arith.constant 2.000000e-01 : f32
    %162 = vector.broadcast %cst_72 : f32 to vector<8x256xf32>
    %163 = arith.mulf %162, %159 : vector<8x256xf32>
    %164 = arith.select %161, %159, %163 : vector<8x256xi1>, vector<8x256xf32>
    %c36 = arith.constant 36 : index
    %c0_73 = arith.constant 0 : index
    %c0_74 = arith.constant 0 : index
    %165 = vector.load %arg2[%c36, %c0_73, %c0_74] : memref<52x8x1xf32, #tpu.memory_space<vmem>>, vector<1x8x1xf32>
    %166 = vector.shape_cast %165 : vector<1x8x1xf32> to vector<8x1xf32>
    %167 = vector.broadcast %166 : vector<8x1xf32> to vector<8x256xf32>
    %168 = arith.mulf %80, %167 : vector<8x256xf32>
    %c40 = arith.constant 40 : index
    %c0_75 = arith.constant 0 : index
    %c0_76 = arith.constant 0 : index
    %169 = vector.load %arg2[%c40, %c0_75, %c0_76] : memref<52x8x1xf32, #tpu.memory_space<vmem>>, vector<1x8x1xf32>
    %170 = vector.shape_cast %169 : vector<1x8x1xf32> to vector<8x1xf32>
    %171 = vector.broadcast %170 : vector<8x1xf32> to vector<8x256xf32>
    %172 = arith.mulf %108, %171 : vector<8x256xf32>
    %173 = arith.addf %168, %172 : vector<8x256xf32>
    %c44 = arith.constant 44 : index
    %c0_77 = arith.constant 0 : index
    %c0_78 = arith.constant 0 : index
    %174 = vector.load %arg2[%c44, %c0_77, %c0_78] : memref<52x8x1xf32, #tpu.memory_space<vmem>>, vector<1x8x1xf32>
    %175 = vector.shape_cast %174 : vector<1x8x1xf32> to vector<8x1xf32>
    %176 = vector.broadcast %175 : vector<8x1xf32> to vector<8x256xf32>
    %177 = arith.mulf %136, %176 : vector<8x256xf32>
    %178 = arith.addf %173, %177 : vector<8x256xf32>
    %c48 = arith.constant 48 : index
    %c0_79 = arith.constant 0 : index
    %c0_80 = arith.constant 0 : index
    %179 = vector.load %arg2[%c48, %c0_79, %c0_80] : memref<52x8x1xf32, #tpu.memory_space<vmem>>, vector<1x8x1xf32>
    %180 = vector.shape_cast %179 : vector<1x8x1xf32> to vector<8x1xf32>
    %181 = vector.broadcast %180 : vector<8x1xf32> to vector<8x256xf32>
    %182 = arith.mulf %164, %181 : vector<8x256xf32>
    %183 = arith.addf %178, %182 : vector<8x256xf32>
    %c37 = arith.constant 37 : index
    %c0_81 = arith.constant 0 : index
    %c0_82 = arith.constant 0 : index
    %184 = vector.load %arg2[%c37, %c0_81, %c0_82] : memref<52x8x1xf32, #tpu.memory_space<vmem>>, vector<1x8x1xf32>
    %185 = vector.shape_cast %184 : vector<1x8x1xf32> to vector<8x1xf32>
    %186 = vector.broadcast %185 : vector<8x1xf32> to vector<8x256xf32>
    %187 = arith.mulf %80, %186 : vector<8x256xf32>
    %c41 = arith.constant 41 : index
    %c0_83 = arith.constant 0 : index
    %c0_84 = arith.constant 0 : index
    %188 = vector.load %arg2[%c41, %c0_83, %c0_84] : memref<52x8x1xf32, #tpu.memory_space<vmem>>, vector<1x8x1xf32>
    %189 = vector.shape_cast %188 : vector<1x8x1xf32> to vector<8x1xf32>
    %190 = vector.broadcast %189 : vector<8x1xf32> to vector<8x256xf32>
    %191 = arith.mulf %108, %190 : vector<8x256xf32>
    %192 = arith.addf %187, %191 : vector<8x256xf32>
    %c45 = arith.constant 45 : index
    %c0_85 = arith.constant 0 : index
    %c0_86 = arith.constant 0 : index
    %193 = vector.load %arg2[%c45, %c0_85, %c0_86] : memref<52x8x1xf32, #tpu.memory_space<vmem>>, vector<1x8x1xf32>
    %194 = vector.shape_cast %193 : vector<1x8x1xf32> to vector<8x1xf32>
    %195 = vector.broadcast %194 : vector<8x1xf32> to vector<8x256xf32>
    %196 = arith.mulf %136, %195 : vector<8x256xf32>
    %197 = arith.addf %192, %196 : vector<8x256xf32>
    %c49 = arith.constant 49 : index
    %c0_87 = arith.constant 0 : index
    %c0_88 = arith.constant 0 : index
    %198 = vector.load %arg2[%c49, %c0_87, %c0_88] : memref<52x8x1xf32, #tpu.memory_space<vmem>>, vector<1x8x1xf32>
    %199 = vector.shape_cast %198 : vector<1x8x1xf32> to vector<8x1xf32>
    %200 = vector.broadcast %199 : vector<8x1xf32> to vector<8x256xf32>
    %201 = arith.mulf %164, %200 : vector<8x256xf32>
    %202 = arith.addf %197, %201 : vector<8x256xf32>
    %c38 = arith.constant 38 : index
    %c0_89 = arith.constant 0 : index
    %c0_90 = arith.constant 0 : index
    %203 = vector.load %arg2[%c38, %c0_89, %c0_90] : memref<52x8x1xf32, #tpu.memory_space<vmem>>, vector<1x8x1xf32>
    %204 = vector.shape_cast %203 : vector<1x8x1xf32> to vector<8x1xf32>
    %205 = vector.broadcast %204 : vector<8x1xf32> to vector<8x256xf32>
    %206 = arith.mulf %80, %205 : vector<8x256xf32>
    %c42 = arith.constant 42 : index
    %c0_91 = arith.constant 0 : index
    %c0_92 = arith.constant 0 : index
    %207 = vector.load %arg2[%c42, %c0_91, %c0_92] : memref<52x8x1xf32, #tpu.memory_space<vmem>>, vector<1x8x1xf32>
    %208 = vector.shape_cast %207 : vector<1x8x1xf32> to vector<8x1xf32>
    %209 = vector.broadcast %208 : vector<8x1xf32> to vector<8x256xf32>
    %210 = arith.mulf %108, %209 : vector<8x256xf32>
    %211 = arith.addf %206, %210 : vector<8x256xf32>
    %c46 = arith.constant 46 : index
    %c0_93 = arith.constant 0 : index
    %c0_94 = arith.constant 0 : index
    %212 = vector.load %arg2[%c46, %c0_93, %c0_94] : memref<52x8x1xf32, #tpu.memory_space<vmem>>, vector<1x8x1xf32>
    %213 = vector.shape_cast %212 : vector<1x8x1xf32> to vector<8x1xf32>
    %214 = vector.broadcast %213 : vector<8x1xf32> to vector<8x256xf32>
    %215 = arith.mulf %136, %214 : vector<8x256xf32>
    %216 = arith.addf %211, %215 : vector<8x256xf32>
    %c50 = arith.constant 50 : index
    %c0_95 = arith.constant 0 : index
    %c0_96 = arith.constant 0 : index
    %217 = vector.load %arg2[%c50, %c0_95, %c0_96] : memref<52x8x1xf32, #tpu.memory_space<vmem>>, vector<1x8x1xf32>
    %218 = vector.shape_cast %217 : vector<1x8x1xf32> to vector<8x1xf32>
    %219 = vector.broadcast %218 : vector<8x1xf32> to vector<8x256xf32>
    %220 = arith.mulf %164, %219 : vector<8x256xf32>
    %221 = arith.addf %216, %220 : vector<8x256xf32>
    %c39 = arith.constant 39 : index
    %c0_97 = arith.constant 0 : index
    %c0_98 = arith.constant 0 : index
    %222 = vector.load %arg2[%c39, %c0_97, %c0_98] : memref<52x8x1xf32, #tpu.memory_space<vmem>>, vector<1x8x1xf32>
    %223 = vector.shape_cast %222 : vector<1x8x1xf32> to vector<8x1xf32>
    %224 = vector.broadcast %223 : vector<8x1xf32> to vector<8x256xf32>
    %225 = arith.mulf %80, %224 : vector<8x256xf32>
    %c43 = arith.constant 43 : index
    %c0_99 = arith.constant 0 : index
    %c0_100 = arith.constant 0 : index
    %226 = vector.load %arg2[%c43, %c0_99, %c0_100] : memref<52x8x1xf32, #tpu.memory_space<vmem>>, vector<1x8x1xf32>
    %227 = vector.shape_cast %226 : vector<1x8x1xf32> to vector<8x1xf32>
    %228 = vector.broadcast %227 : vector<8x1xf32> to vector<8x256xf32>
    %229 = arith.mulf %108, %228 : vector<8x256xf32>
    %230 = arith.addf %225, %229 : vector<8x256xf32>
    %c47 = arith.constant 47 : index
    %c0_101 = arith.constant 0 : index
    %c0_102 = arith.constant 0 : index
    %231 = vector.load %arg2[%c47, %c0_101, %c0_102] : memref<52x8x1xf32, #tpu.memory_space<vmem>>, vector<1x8x1xf32>
    %232 = vector.shape_cast %231 : vector<1x8x1xf32> to vector<8x1xf32>
    %233 = vector.broadcast %232 : vector<8x1xf32> to vector<8x256xf32>
    %234 = arith.mulf %136, %233 : vector<8x256xf32>
    %235 = arith.addf %230, %234 : vector<8x256xf32>
    %c51 = arith.constant 51 : index
    %c0_103 = arith.constant 0 : index
    %c0_104 = arith.constant 0 : index
    %236 = vector.load %arg2[%c51, %c0_103, %c0_104] : memref<52x8x1xf32, #tpu.memory_space<vmem>>, vector<1x8x1xf32>
    %237 = vector.shape_cast %236 : vector<1x8x1xf32> to vector<8x1xf32>
    %238 = vector.broadcast %237 : vector<8x1xf32> to vector<8x256xf32>
    %239 = arith.mulf %164, %238 : vector<8x256xf32>
    %240 = arith.addf %235, %239 : vector<8x256xf32>
    %241 = arith.addf %183, %202 : vector<8x256xf32>
    %242 = arith.addf %241, %221 : vector<8x256xf32>
    %243 = arith.addf %242, %240 : vector<8x256xf32>
    %cst_105 = arith.constant 2.500000e-01 : f32
    %244 = vector.broadcast %cst_105 : f32 to vector<8x256xf32>
    %245 = arith.mulf %243, %244 : vector<8x256xf32>
    %246 = arith.subf %183, %245 : vector<8x256xf32>
    %247 = arith.mulf %246, %246 : vector<8x256xf32>
    %248 = arith.subf %202, %245 : vector<8x256xf32>
    %249 = arith.mulf %248, %248 : vector<8x256xf32>
    %250 = arith.addf %247, %249 : vector<8x256xf32>
    %251 = arith.subf %221, %245 : vector<8x256xf32>
    %252 = arith.mulf %251, %251 : vector<8x256xf32>
    %253 = arith.addf %250, %252 : vector<8x256xf32>
    %254 = arith.subf %240, %245 : vector<8x256xf32>
    %255 = arith.mulf %254, %254 : vector<8x256xf32>
    %256 = arith.addf %253, %255 : vector<8x256xf32>
    %cst_106 = arith.constant 2.500000e-01 : f32
    %257 = vector.broadcast %cst_106 : f32 to vector<8x256xf32>
    %258 = arith.mulf %256, %257 : vector<8x256xf32>
    %cst_107 = arith.constant 9.99999974E-6 : f32
    %259 = vector.broadcast %cst_107 : f32 to vector<8x256xf32>
    %260 = arith.addf %258, %259 : vector<8x256xf32>
    %261 = math.rsqrt %260 : vector<8x256xf32>
    %262 = arith.subf %183, %245 : vector<8x256xf32>
    %263 = arith.mulf %262, %261 : vector<8x256xf32>
    %c12 = arith.constant 12 : index
    %c0_108 = arith.constant 0 : index
    %c0_109 = arith.constant 0 : index
    %264 = vector.load %arg2[%c12, %c0_108, %c0_109] : memref<52x8x1xf32, #tpu.memory_space<vmem>>, vector<1x8x1xf32>
    %265 = vector.shape_cast %264 : vector<1x8x1xf32> to vector<8x1xf32>
    %266 = vector.broadcast %265 : vector<8x1xf32> to vector<8x256xf32>
    %267 = arith.mulf %263, %266 : vector<8x256xf32>
    %c16 = arith.constant 16 : index
    %c0_110 = arith.constant 0 : index
    %c0_111 = arith.constant 0 : index
    %268 = vector.load %arg2[%c16, %c0_110, %c0_111] : memref<52x8x1xf32, #tpu.memory_space<vmem>>, vector<1x8x1xf32>
    %269 = vector.shape_cast %268 : vector<1x8x1xf32> to vector<8x1xf32>
    %270 = vector.broadcast %269 : vector<8x1xf32> to vector<8x256xf32>
    %271 = arith.addf %267, %270 : vector<8x256xf32>
    %272 = arith.subf %202, %245 : vector<8x256xf32>
    %273 = arith.mulf %272, %261 : vector<8x256xf32>
    %c13 = arith.constant 13 : index
    %c0_112 = arith.constant 0 : index
    %c0_113 = arith.constant 0 : index
    %274 = vector.load %arg2[%c13, %c0_112, %c0_113] : memref<52x8x1xf32, #tpu.memory_space<vmem>>, vector<1x8x1xf32>
    %275 = vector.shape_cast %274 : vector<1x8x1xf32> to vector<8x1xf32>
    %276 = vector.broadcast %275 : vector<8x1xf32> to vector<8x256xf32>
    %277 = arith.mulf %273, %276 : vector<8x256xf32>
    %c17 = arith.constant 17 : index
    %c0_114 = arith.constant 0 : index
    %c0_115 = arith.constant 0 : index
    %278 = vector.load %arg2[%c17, %c0_114, %c0_115] : memref<52x8x1xf32, #tpu.memory_space<vmem>>, vector<1x8x1xf32>
    %279 = vector.shape_cast %278 : vector<1x8x1xf32> to vector<8x1xf32>
    %280 = vector.broadcast %279 : vector<8x1xf32> to vector<8x256xf32>
    %281 = arith.addf %277, %280 : vector<8x256xf32>
    %282 = arith.subf %221, %245 : vector<8x256xf32>
    %283 = arith.mulf %282, %261 : vector<8x256xf32>
    %c14 = arith.constant 14 : index
    %c0_116 = arith.constant 0 : index
    %c0_117 = arith.constant 0 : index
    %284 = vector.load %arg2[%c14, %c0_116, %c0_117] : memref<52x8x1xf32, #tpu.memory_space<vmem>>, vector<1x8x1xf32>
    %285 = vector.shape_cast %284 : vector<1x8x1xf32> to vector<8x1xf32>
    %286 = vector.broadcast %285 : vector<8x1xf32> to vector<8x256xf32>
    %287 = arith.mulf %283, %286 : vector<8x256xf32>
    %c18 = arith.constant 18 : index
    %c0_118 = arith.constant 0 : index
    %c0_119 = arith.constant 0 : index
    %288 = vector.load %arg2[%c18, %c0_118, %c0_119] : memref<52x8x1xf32, #tpu.memory_space<vmem>>, vector<1x8x1xf32>
    %289 = vector.shape_cast %288 : vector<1x8x1xf32> to vector<8x1xf32>
    %290 = vector.broadcast %289 : vector<8x1xf32> to vector<8x256xf32>
    %291 = arith.addf %287, %290 : vector<8x256xf32>
    %292 = arith.subf %240, %245 : vector<8x256xf32>
    %293 = arith.mulf %292, %261 : vector<8x256xf32>
    %c15 = arith.constant 15 : index
    %c0_120 = arith.constant 0 : index
    %c0_121 = arith.constant 0 : index
    %294 = vector.load %arg2[%c15, %c0_120, %c0_121] : memref<52x8x1xf32, #tpu.memory_space<vmem>>, vector<1x8x1xf32>
    %295 = vector.shape_cast %294 : vector<1x8x1xf32> to vector<8x1xf32>
    %296 = vector.broadcast %295 : vector<8x1xf32> to vector<8x256xf32>
    %297 = arith.mulf %293, %296 : vector<8x256xf32>
    %c19 = arith.constant 19 : index
    %c0_122 = arith.constant 0 : index
    %c0_123 = arith.constant 0 : index
    %298 = vector.load %arg2[%c19, %c0_122, %c0_123] : memref<52x8x1xf32, #tpu.memory_space<vmem>>, vector<1x8x1xf32>
    %299 = vector.shape_cast %298 : vector<1x8x1xf32> to vector<8x1xf32>
    %300 = vector.broadcast %299 : vector<8x1xf32> to vector<8x256xf32>
    %301 = arith.addf %297, %300 : vector<8x256xf32>
    %302 = tpu.concatenate %271, %281, %291, %301 in 1 : vector<8x256xf32>, vector<8x256xf32>, vector<8x256xf32>, vector<8x256xf32> -> vector<8x1024xf32>
    %303 = arith.truncf %302 : vector<8x1024xf32> to vector<8x1024xbf16>
    %c0_124 = arith.constant 0 : index
    %c0_125 = arith.constant 0 : index
    %304 = vector.load %arg3[%c0_124, %c0_125] : memref<16x8xbf16, #tpu.memory_space<vmem>>, vector<16x8xbf16>
    %cst_126 = arith.constant dense<0.000000e+00> : vector<16x1024xf32>
    %305 = tpu.matmul %304, %303, %cst_126 {dimension_numbers = #tpu.dot_dimension_numbers<[1], [0], [0], [1], [0, 0, 1, 1], [], []>} : vector<16x8xbf16>, vector<8x1024xbf16>, vector<16x1024xf32> -> vector<16x1024xf32>
    %306 = arith.truncf %305 : vector<16x1024xf32> to vector<16x1024xbf16>
    %c0_127 = arith.constant 0 : index
    %c0_128 = arith.constant 0 : index
    %307 = vector.load %arg4[%c0_127, %c0_128] : memref<16x1024xbf16, #tpu.memory_space<vmem>>, vector<16x1024xbf16>
    tpu.vector_store %arg4[%c0_127, %c0_128], %306 {strides = array<i32>} : memref<16x1024xbf16, #tpu.memory_space<vmem>>, vector<16x1024xbf16>,
    return
  }
  func.func @transform_0(%arg0: i32) -> (i32, i32) {
    %c0_i32 = arith.constant 0 : i32
    %c0_i32_0 = arith.constant 0 : i32
    %c0_i32_1 = arith.constant 0 : i32
    return %c0_i32, %c0_i32_0 : i32, i32
  }
  func.func @transform_1(%arg0: i32) -> (i32, i32, i32) {
    %c0_i32 = arith.constant 0 : i32
    %c0_i32_0 = arith.constant 0 : i32
    %c0_i32_1 = arith.constant 0 : i32
    %c0_i32_2 = arith.constant 0 : i32
    return %c0_i32, %c0_i32_0, %c0_i32_1 : i32, i32, i32
  }
  func.func @transform_2(%arg0: i32) -> (i32, i32) {
    %c0_i32 = arith.constant 0 : i32
    %c0_i32_0 = arith.constant 0 : i32
    %c0_i32_1 = arith.constant 0 : i32
    return %c0_i32, %c0_i32_0 : i32, i32
  }
  func.func @transform_3(%arg0: i32) -> (i32, i32) {
    %c0_i32 = arith.constant 0 : i32
    %c0_i32_0 = arith.constant 0 : i32
    %c0_i32_1 = arith.constant 0 : i32
    return %c0_i32, %c0_i32_0 : i32, i32
  }
}

</mosaic_0001>

<llo_original>
// kernel: tpu_custom_call.1
$region0: #{tpu_custom_call.1}
  #allocation0 [shape = 'u32[]', space=smem, size = 0x4, offset = 0x4, fixed_abs, tag = 'smem constant byte address 0x4 - core index']
  #allocation1 [shape = 'u32[144,128]{1,0:T(1,128)}', space=vmem, size = 0x12000, scoped, tag = 'internal scratch']
  %s0 = inlined_call_operand.vmem [shape: f32[8,256], index: 0, kind: input, shape index: {}]
  %s1 = inlined_call_operand.vmem [shape: f32[52,8,1], index: 1, kind: input, shape index: {}]
  %s2 = inlined_call_operand.vmem [shape: bf16[16,8], index: 2, kind: input, shape index: {}]
  %s3 = inlined_call_operand.hbm [shape: bf16[16,1024], index: 3, kind: output, shape index: {}]
  %s4 = sld [smem:[#allocation0]]
  $region22: #{tpu_custom_call.1} parent=0
    _
  %s6 = ssub.s32 1, %s4
  %s7 = scalar_select 0, %s6, %s4
  $region1: #{tpu_custom_call.1} parent=0
    #allocation2 [shape = 'u8[32768]{0}', space=vmem, size = 0x8000, scoped, tag = 'output window, operand 0, single buffered']
    #allocation3 [shape = 's32[1]{0}', space=sflag, size = 0x4, scoped, tag = 'scoped memory for tpu_custom_call.1']
    %8 = vsyncpa [#allocation3], 0
    // Predicated region
    $region2: #{tpu_custom_call.1} parent=1 // pred_check
      _
    $region3: #{tpu_custom_call.1} parent=1 // pred_check_branch
      %10 = sbr.rel (0) target = $region5
    $region4: #{tpu_custom_call.1} parent=1 // pred_region
      _
    $region5: #{tpu_custom_call.1} parent=1 // pred_fallthru
      _
    // Predicated region
    $region6: #{tpu_custom_call.1} parent=1 // pred_check
      _
    $region7: #{tpu_custom_call.1} parent=1 // pred_check_branch
      %12 = sbr.rel (0) target = $region9
    $region8: #{tpu_custom_call.1} parent=1 // pred_region
      _
    $region9: #{tpu_custom_call.1} parent=1 // pred_fallthru
      _
    // Predicated region
    $region10: #{tpu_custom_call.1} parent=1 // pred_check
      _
    $region11: #{tpu_custom_call.1} parent=1 // pred_check_branch
      %14 = sbr.rel (0) target = $region13
    $region12: #{tpu_custom_call.1} parent=1 // pred_region
      _
    $region13: #{tpu_custom_call.1} parent=1 // pred_fallthru
      _
    %v16 = vld [vmem:[%s0] sm:$0xff]
    %v17 = vld [vmem:[%s0 + $0x8] sm:$0xff]
    %v18 = vld [vmem:[%s1] sm:$0xff]
    %20 = vset.pattern.permute.xlu0 0
    %21 = vperm.xlu0 %20, %v18
    %v22 = vpop.permute.xlu0 %21
    %v24 = vmul.f32 %v22, %v16
    %v25 = vmul.f32 %v22, %v17
    %s26 = scalar_lea.vmem %s1, 32
    %v27 = vld [vmem:[%s26] sm:$0xff]
    %29 = vset.pattern.permute.xlu0 0
    %30 = vperm.xlu0 %29, %v27
    %v31 = vpop.permute.xlu0 %30
    %v33 = vadd.f32 %v24, %v31
    %v34 = vadd.f32 %v25, %v31
    %vm35 = vcmp.ge.f32.partialorder %v33, 0.0
    %vm36 = vcmp.ge.f32.partialorder %v34, 0.0
    %v37 = vmul.f32 %v33, 0.2
    %v38 = vmul.f32 %v34, 0.2
    %v39 = vsel %vm35, %v33, %v37
    %v40 = vsel %vm36, %v34, %v38
    %s41 = scalar_lea.vmem %s1, 8
    %v42 = vld [vmem:[%s41] sm:$0xff]
    %44 = vset.pattern.permute.xlu0 0
    %45 = vperm.xlu0 %44, %v42
    %v46 = vpop.permute.xlu0 %45
    %v48 = vmul.f32 %v46, %v16
    %v49 = vmul.f32 %v46, %v17
    %s50 = scalar_lea.vmem %s1, 40
    %v51 = vld [vmem:[%s50] sm:$0xff]
    %53 = vset.pattern.permute.xlu0 0
    %54 = vperm.xlu0 %53, %v51
    %v55 = vpop.permute.xlu0 %54
    %v57 = vadd.f32 %v48, %v55
    %v58 = vadd.f32 %v49, %v55
    %vm59 = vcmp.ge.f32.partialorder %v57, 0.0
    %vm60 = vcmp.ge.f32.partialorder %v58, 0.0
    %v61 = vmul.f32 %v57, 0.2
    %v62 = vmul.f32 %v58, 0.2
    %v63 = vsel %vm59, %v57, %v61
    %v64 = vsel %vm60, %v58, %v62
    %s65 = scalar_lea.vmem %s1, 16
    %v66 = vld [vmem:[%s65] sm:$0xff]
    %68 = vset.pattern.permute.xlu0 0
    %69 = vperm.xlu0 %68, %v66
    %v70 = vpop.permute.xlu0 %69
    %v72 = vmul.f32 %v70, %v16
    %v73 = vmul.f32 %v70, %v17
    %s74 = scalar_lea.vmem %s1, 48
    %v75 = vld [vmem:[%s74] sm:$0xff]
    %77 = vset.pattern.permute.xlu0 0
    %78 = vperm.xlu0 %77, %v75
    %v79 = vpop.permute.xlu0 %78
    %v81 = vadd.f32 %v72, %v79
    %v82 = vadd.f32 %v73, %v79
    %vm83 = vcmp.ge.f32.partialorder %v81, 0.0
    %vm84 = vcmp.ge.f32.partialorder %v82, 0.0
    %v85 = vmul.f32 %v81, 0.2
    %v86 = vmul.f32 %v82, 0.2
    %v87 = vsel %vm83, %v81, %v85
    %v88 = vsel %vm84, %v82, %v86
    %s89 = scalar_lea.vmem %s1, 24
    %v90 = vld [vmem:[%s89] sm:$0xff]
    %92 = vset.pattern.permute.xlu0 0
    %93 = vperm.xlu0 %92, %v90
    %v94 = vpop.permute.xlu0 %93
    %v96 = vmul.f32 %v94, %v16
    %v97 = vmul.f32 %v94, %v17
    %s98 = scalar_lea.vmem %s1, 56
    %v99 = vld [vmem:[%s98] sm:$0xff]
    %101 = vset.pattern.permute.xlu0 0
    %102 = vperm.xlu0 %101, %v99
    %v103 = vpop.permute.xlu0 %102
    %v105 = vadd.f32 %v96, %v103
    %v106 = vadd.f32 %v97, %v103
    %vm107 = vcmp.ge.f32.partialorder %v105, 0.0
    %vm108 = vcmp.ge.f32.partialorder %v106, 0.0
    %v109 = vmul.f32 %v105, 0.2
    %v110 = vmul.f32 %v106, 0.2
    %v111 = vsel %vm107, %v105, %v109
    %v112 = vsel %vm108, %v106, %v110
    %s113 = scalar_lea.vmem %s1, 64
    %v114 = vld [vmem:[%s113] sm:$0xff]
    %s115 = scalar_lea.vmem %s1, 160
    %v116 = vld [vmem:[%s115] sm:$0xff]
    %118 = vset.pattern.permute.xlu0 0
    %119 = vperm.xlu0 %118, %v116
    %v120 = vpop.permute.xlu0 %119
    %v122 = vmul.f32 %v39, %v120
    %v123 = vmul.f32 %v40, %v120
    %125 = vset.pattern.permute.xlu0 0
    %126 = vperm.xlu0 %125, %v114
    %v127 = vpop.permute.xlu0 %126
    %v129 = vadd.f32 %v127, %v122
    %v130 = vadd.f32 %v127, %v123
    %s131 = scalar_lea.vmem %s1, 192
    %v132 = vld [vmem:[%s131] sm:$0xff]
    %134 = vset.pattern.permute.xlu0 0
    %135 = vperm.xlu0 %134, %v132
    %v136 = vpop.permute.xlu0 %135
    %v138 = vmul.f32 %v63, %v136
    %v139 = vmul.f32 %v64, %v136
    %v140 = vadd.f32 %v129, %v138
    %v141 = vadd.f32 %v130, %v139
    %s142 = scalar_lea.vmem %s1, 224
    %v143 = vld [vmem:[%s142] sm:$0xff]
    %145 = vset.pattern.permute.xlu0 0
    %146 = vperm.xlu0 %145, %v143
    %v147 = vpop.permute.xlu0 %146
    %v149 = vmul.f32 %v87, %v147
    %v150 = vmul.f32 %v88, %v147
    %v151 = vadd.f32 %v140, %v149
    %v152 = vadd.f32 %v141, %v150
    %s153 = scalar_lea.vmem %s1, 256
    %v154 = vld [vmem:[%s153] sm:$0xff]
    %156 = vset.pattern.permute.xlu0 0
    %157 = vperm.xlu0 %156, %v154
    %v158 = vpop.permute.xlu0 %157
    %v160 = vmul.f32 %v111, %v158
    %v161 = vmul.f32 %v112, %v158
    %v162 = vadd.f32 %v151, %v160
    %v163 = vadd.f32 %v152, %v161
    %vm164 = vcmp.ge.f32.partialorder %v162, 0.0
    %vm165 = vcmp.ge.f32.partialorder %v163, 0.0
    %v166 = vmul.f32 %v162, 0.2
    %v167 = vmul.f32 %v163, 0.2
    %v168 = vsel %vm164, %v162, %v166
    %v169 = vsel %vm165, %v163, %v167
    %s170 = scalar_lea.vmem %s1, 72
    %v171 = vld [vmem:[%s170] sm:$0xff]
    %s172 = scalar_lea.vmem %s1, 168
    %v173 = vld [vmem:[%s172] sm:$0xff]
    %175 = vset.pattern.permute.xlu0 0
    %176 = vperm.xlu0 %175, %v173
    %v177 = vpop.permute.xlu0 %176
    %v179 = vmul.f32 %v39, %v177
    %v180 = vmul.f32 %v40, %v177
    %182 = vset.pattern.permute.xlu0 0
    %183 = vperm.xlu0 %182, %v171
    %v184 = vpop.permute.xlu0 %183
    %v186 = vadd.f32 %v184, %v179
    %v187 = vadd.f32 %v184, %v180
    %s188 = scalar_lea.vmem %s1, 200
    %v189 = vld [vmem:[%s188] sm:$0xff]
    %191 = vset.pattern.permute.xlu0 0
    %192 = vperm.xlu0 %191, %v189
    %v193 = vpop.permute.xlu0 %192
    %v195 = vmul.f32 %v63, %v193
    %v196 = vmul.f32 %v64, %v193
    %v197 = vadd.f32 %v186, %v195
    %v198 = vadd.f32 %v187, %v196
    %s199 = scalar_lea.vmem %s1, 232
    %v200 = vld [vmem:[%s199] sm:$0xff]
    %202 = vset.pattern.permute.xlu0 0
    %203 = vperm.xlu0 %202, %v200
    %v204 = vpop.permute.xlu0 %203
    %v206 = vmul.f32 %v87, %v204
    %v207 = vmul.f32 %v88, %v204
    %v208 = vadd.f32 %v197, %v206
    %v209 = vadd.f32 %v198, %v207
    %s210 = scalar_lea.vmem %s1, 264
    %v211 = vld [vmem:[%s210] sm:$0xff]
    %213 = vset.pattern.permute.xlu0 0
    %214 = vperm.xlu0 %213, %v211
    %v215 = vpop.permute.xlu0 %214
    %v217 = vmul.f32 %v111, %v215
    %v218 = vmul.f32 %v112, %v215
    %v219 = vadd.f32 %v208, %v217
    %v220 = vadd.f32 %v209, %v218
    %vm221 = vcmp.ge.f32.partialorder %v219, 0.0
    %vm222 = vcmp.ge.f32.partialorder %v220, 0.0
    %v223 = vmul.f32 %v219, 0.2
    %v224 = vmul.f32 %v220, 0.2
    %v225 = vsel %vm221, %v219, %v223
    %v226 = vsel %vm222, %v220, %v224
    %s227 = scalar_lea.vmem %s1, 80
    %v228 = vld [vmem:[%s227] sm:$0xff]
    %s229 = scalar_lea.vmem %s1, 176
    %v230 = vld [vmem:[%s229] sm:$0xff]
    %232 = vset.pattern.permute.xlu0 0
    %233 = vperm.xlu0 %232, %v230
    %v234 = vpop.permute.xlu0 %233
    %v236 = vmul.f32 %v39, %v234
    %v237 = vmul.f32 %v40, %v234
    %239 = vset.pattern.permute.xlu0 0
    %240 = vperm.xlu0 %239, %v228
    %v241 = vpop.permute.xlu0 %240
    %v243 = vadd.f32 %v241, %v236
    %v244 = vadd.f32 %v241, %v237
    %s245 = scalar_lea.vmem %s1, 208
    %v246 = vld [vmem:[%s245] sm:$0xff]
    %248 = vset.pattern.permute.xlu0 0
    %249 = vperm.xlu0 %248, %v246
    %v250 = vpop.permute.xlu0 %249
    %v252 = vmul.f32 %v63, %v250
    %v253 = vmul.f32 %v64, %v250
    %v254 = vadd.f32 %v243, %v252
    %v255 = vadd.f32 %v244, %v253
    %s256 = scalar_lea.vmem %s1, 240
    %v257 = vld [vmem:[%s256] sm:$0xff]
    %259 = vset.pattern.permute.xlu0 0
    %260 = vperm.xlu0 %259, %v257
    %v261 = vpop.permute.xlu0 %260
    %v263 = vmul.f32 %v87, %v261
    %v264 = vmul.f32 %v88, %v261
    %v265 = vadd.f32 %v254, %v263
    %v266 = vadd.f32 %v255, %v264
    %s267 = scalar_lea.vmem %s1, 272
    %v268 = vld [vmem:[%s267] sm:$0xff]
    %270 = vset.pattern.permute.xlu0 0
    %271 = vperm.xlu0 %270, %v268
    %v272 = vpop.permute.xlu0 %271
    %v274 = vmul.f32 %v111, %v272
    %v275 = vmul.f32 %v112, %v272
    %v276 = vadd.f32 %v265, %v274
    %v277 = vadd.f32 %v266, %v275
    %vm278 = vcmp.ge.f32.partialorder %v276, 0.0
    %vm279 = vcmp.ge.f32.partialorder %v277, 0.0
    %v280 = vmul.f32 %v276, 0.2
    %v281 = vmul.f32 %v277, 0.2
    %v282 = vsel %vm278, %v276, %v280
    %v283 = vsel %vm279, %v277, %v281
    %s284 = scalar_lea.vmem %s1, 88
    %v285 = vld [vmem:[%s284] sm:$0xff]
    %s286 = scalar_lea.vmem %s1, 184
    %v287 = vld [vmem:[%s286] sm:$0xff]
    %289 = vset.pattern.permute.xlu0 0
    %290 = vperm.xlu0 %289, %v287
    %v291 = vpop.permute.xlu0 %290
    %v293 = vmul.f32 %v39, %v291
    %v294 = vmul.f32 %v40, %v291
    %296 = vset.pattern.permute.xlu0 0
    %297 = vperm.xlu0 %296, %v285
    %v298 = vpop.permute.xlu0 %297
    %v300 = vadd.f32 %v298, %v293
    %v301 = vadd.f32 %v298, %v294
    %s302 = scalar_lea.vmem %s1, 216
    %v303 = vld [vmem:[%s302] sm:$0xff]
    %305 = vset.pattern.permute.xlu0 0
    %306 = vperm.xlu0 %305, %v303
    %v307 = vpop.permute.xlu0 %306
    %v309 = vmul.f32 %v63, %v307
    %v310 = vmul.f32 %v64, %v307
    %v311 = vadd.f32 %v300, %v309
    %v312 = vadd.f32 %v301, %v310
    %s313 = scalar_lea.vmem %s1, 248
    %v314 = vld [vmem:[%s313] sm:$0xff]
    %316 = vset.pattern.permute.xlu0 0
    %317 = vperm.xlu0 %316, %v314
    %v318 = vpop.permute.xlu0 %317
    %v320 = vmul.f32 %v87, %v318
    %v321 = vmul.f32 %v88, %v318
    %v322 = vadd.f32 %v311, %v320
    %v323 = vadd.f32 %v312, %v321
    %s324 = scalar_lea.vmem %s1, 280
    %v325 = vld [vmem:[%s324] sm:$0xff]
    %327 = vset.pattern.permute.xlu0 0
    %328 = vperm.xlu0 %327, %v325
    %v329 = vpop.permute.xlu0 %328
    %v331 = vmul.f32 %v111, %v329
    %v332 = vmul.f32 %v112, %v329
    %v333 = vadd.f32 %v322, %v331
    %v334 = vadd.f32 %v323, %v332
    %vm335 = vcmp.ge.f32.partialorder %v333, 0.0
    %vm336 = vcmp.ge.f32.partialorder %v334, 0.0
    %v337 = vmul.f32 %v333, 0.2
    %v338 = vmul.f32 %v334, 0.2
    %v339 = vsel %vm335, %v333, %v337
    %v340 = vsel %vm336, %v334, %v338
    %s341 = scalar_lea.vmem %s1, 288
    %v342 = vld [vmem:[%s341] sm:$0xff]
    %344 = vset.pattern.permute.xlu0 0
    %345 = vperm.xlu0 %344, %v342
    %v346 = vpop.permute.xlu0 %345
    %v348 = vmul.f32 %v168, %v346
    %v349 = vmul.f32 %v169, %v346
    %s350 = scalar_lea.vmem %s1, 320
    %v351 = vld [vmem:[%s350] sm:$0xff]
    %353 = vset.pattern.permute.xlu0 0
    %354 = vperm.xlu0 %353, %v351
    %v355 = vpop.permute.xlu0 %354
    %v357 = vmul.f32 %v225, %v355
    %v358 = vmul.f32 %v226, %v355
    %v359 = vadd.f32 %v348, %v357
    %v360 = vadd.f32 %v349, %v358
    %s361 = scalar_lea.vmem %s1, 352
    %v362 = vld [vmem:[%s361] sm:$0xff]
    %364 = vset.pattern.permute.xlu0 0
    %365 = vperm.xlu0 %364, %v362
    %v366 = vpop.permute.xlu0 %365
    %v368 = vmul.f32 %v282, %v366
    %v369 = vmul.f32 %v283, %v366
    %v370 = vadd.f32 %v359, %v368
    %v371 = vadd.f32 %v360, %v369
    %s372 = scalar_lea.vmem %s1, 384
    %v373 = vld [vmem:[%s372] sm:$0xff]
    %375 = vset.pattern.permute.xlu0 0
    %376 = vperm.xlu0 %375, %v373
    %v377 = vpop.permute.xlu0 %376
    %v379 = vmul.f32 %v339, %v377
    %v380 = vmul.f32 %v340, %v377
    %v381 = vadd.f32 %v370, %v379
    %v382 = vadd.f32 %v371, %v380
    %s383 = scalar_lea.vmem %s1, 296
    %v384 = vld [vmem:[%s383] sm:$0xff]
    %386 = vset.pattern.permute.xlu0 0
    %387 = vperm.xlu0 %386, %v384
    %v388 = vpop.permute.xlu0 %387
    %v390 = vmul.f32 %v168, %v388
    %v391 = vmul.f32 %v169, %v388
    %s392 = scalar_lea.vmem %s1, 328
    %v393 = vld [vmem:[%s392] sm:$0xff]
    %395 = vset.pattern.permute.xlu0 0
    %396 = vperm.xlu0 %395, %v393
    %v397 = vpop.permute.xlu0 %396
    %v399 = vmul.f32 %v225, %v397
    %v400 = vmul.f32 %v226, %v397
    %v401 = vadd.f32 %v390, %v399
    %v402 = vadd.f32 %v391, %v400
    %s403 = scalar_lea.vmem %s1, 360
    %v404 = vld [vmem:[%s403] sm:$0xff]
    %406 = vset.pattern.permute.xlu0 0
    %407 = vperm.xlu0 %406, %v404
    %v408 = vpop.permute.xlu0 %407
    %v410 = vmul.f32 %v282, %v408
    %v411 = vmul.f32 %v283, %v408
    %v412 = vadd.f32 %v401, %v410
    %v413 = vadd.f32 %v402, %v411
    %s414 = scalar_lea.vmem %s1, 392
    %v415 = vld [vmem:[%s414] sm:$0xff]
    %417 = vset.pattern.permute.xlu0 0
    %418 = vperm.xlu0 %417, %v415
    %v419 = vpop.permute.xlu0 %418
    %v421 = vmul.f32 %v339, %v419
    %v422 = vmul.f32 %v340, %v419
    %v423 = vadd.f32 %v412, %v421
    %v424 = vadd.f32 %v413, %v422
    %s425 = scalar_lea.vmem %s1, 304
    %v426 = vld [vmem:[%s425] sm:$0xff]
    %428 = vset.pattern.permute.xlu0 0
    %429 = vperm.xlu0 %428, %v426
    %v430 = vpop.permute.xlu0 %429
    %v432 = vmul.f32 %v168, %v430
    %v433 = vmul.f32 %v169, %v430
    %s434 = scalar_lea.vmem %s1, 336
    %v435 = vld [vmem:[%s434] sm:$0xff]
    %437 = vset.pattern.permute.xlu0 0
    %438 = vperm.xlu0 %437, %v435
    %v439 = vpop.permute.xlu0 %438
    %v441 = vmul.f32 %v225, %v439
    %v442 = vmul.f32 %v226, %v439
    %v443 = vadd.f32 %v432, %v441
    %v444 = vadd.f32 %v433, %v442
    %s445 = scalar_lea.vmem %s1, 368
    %v446 = vld [vmem:[%s445] sm:$0xff]
    %448 = vset.pattern.permute.xlu0 0
    %449 = vperm.xlu0 %448, %v446
    %v450 = vpop.permute.xlu0 %449
    %v452 = vmul.f32 %v282, %v450
    %v453 = vmul.f32 %v283, %v450
    %v454 = vadd.f32 %v443, %v452
    %v455 = vadd.f32 %v444, %v453
    %s456 = scalar_lea.vmem %s1, 400
    %v457 = vld [vmem:[%s456] sm:$0xff]
    %459 = vset.pattern.permute.xlu0 0
    %460 = vperm.xlu0 %459, %v457
    %v461 = vpop.permute.xlu0 %460
    %v463 = vmul.f32 %v339, %v461
    %v464 = vmul.f32 %v340, %v461
    %v465 = vadd.f32 %v454, %v463
    %v466 = vadd.f32 %v455, %v464
    %s467 = scalar_lea.vmem %s1, 312
    %v468 = vld [vmem:[%s467] sm:$0xff]
    %470 = vset.pattern.permute.xlu0 0
    %471 = vperm.xlu0 %470, %v468
    %v472 = vpop.permute.xlu0 %471
    %v474 = vmul.f32 %v168, %v472
    %v475 = vmul.f32 %v169, %v472
    %s476 = scalar_lea.vmem %s1, 344
    %v477 = vld [vmem:[%s476] sm:$0xff]
    %479 = vset.pattern.permute.xlu0 0
    %480 = vperm.xlu0 %479, %v477
    %v481 = vpop.permute.xlu0 %480
    %v483 = vmul.f32 %v225, %v481
    %v484 = vmul.f32 %v226, %v481
    %v485 = vadd.f32 %v474, %v483
    %v486 = vadd.f32 %v475, %v484
    %s487 = scalar_lea.vmem %s1, 376
    %v488 = vld [vmem:[%s487] sm:$0xff]
    %490 = vset.pattern.permute.xlu0 0
    %491 = vperm.xlu0 %490, %v488
    %v492 = vpop.permute.xlu0 %491
    %v494 = vmul.f32 %v282, %v492
    %v495 = vmul.f32 %v283, %v492
    %v496 = vadd.f32 %v485, %v494
    %v497 = vadd.f32 %v486, %v495
    %s498 = scalar_lea.vmem %s1, 408
    %v499 = vld [vmem:[%s498] sm:$0xff]
    %501 = vset.pattern.permute.xlu0 0
    %502 = vperm.xlu0 %501, %v499
    %v503 = vpop.permute.xlu0 %502
    %v505 = vmul.f32 %v339, %v503
    %v506 = vmul.f32 %v340, %v503
    %v507 = vadd.f32 %v496, %v505
    %v508 = vadd.f32 %v497, %v506
    %v509 = vadd.f32 %v381, %v423
    %v510 = vadd.f32 %v382, %v424
    %v511 = vadd.f32 %v509, %v465
    %v512 = vadd.f32 %v510, %v466
    %v513 = vadd.f32 %v511, %v507
    %v514 = vadd.f32 %v512, %v508
    %v515 = vmul.f32 %v513, 0.25
    %v516 = vmul.f32 %v514, 0.25
    %v517 = vsub.f32 %v381, %v515
    %v518 = vsub.f32 %v382, %v516
    %v519 = vmul.f32 %v517, %v517
    %v520 = vmul.f32 %v518, %v518
    %v521 = vsub.f32 %v423, %v515
    %v522 = vsub.f32 %v424, %v516
    %v523 = vmul.f32 %v521, %v521
    %v524 = vmul.f32 %v522, %v522
    %v525 = vadd.f32 %v519, %v523
    %v526 = vadd.f32 %v520, %v524
    %v527 = vsub.f32 %v465, %v515
    %v528 = vsub.f32 %v466, %v516
    %v529 = vmul.f32 %v527, %v527
    %v530 = vmul.f32 %v528, %v528
    %v531 = vadd.f32 %v525, %v529
    %v532 = vadd.f32 %v526, %v530
    %v533 = vsub.f32 %v507, %v515
    %v534 = vsub.f32 %v508, %v516
    %v535 = vmul.f32 %v533, %v533
    %v536 = vmul.f32 %v534, %v534
    %v537 = vadd.f32 %v531, %v535
    %v538 = vadd.f32 %v532, %v536
    %v539 = vmul.f32 %v537, 0.25
    %v540 = vmul.f32 %v538, 0.25
    %v541 = vadd.f32 %v539, 1e-05
    %v542 = vadd.f32 %v540, 1e-05
    %v543 = vrsqrt.pop %v541
    %v544 = vrsqrt.pop %v542
    %v545 = vmul.f32 %v517, %v543
    %v546 = vmul.f32 %v518, %v544
    %s547 = scalar_lea.vmem %s1, 96
    %v548 = vld [vmem:[%s547] sm:$0xff]
    %550 = vset.pattern.permute.xlu0 0
    %551 = vperm.xlu0 %550, %v548
    %v552 = vpop.permute.xlu0 %551
    %v554 = vmul.f32 %v545, %v552
    %v555 = vmul.f32 %v546, %v552
    %s556 = scalar_lea.vmem %s1, 128
    %v557 = vld [vmem:[%s556] sm:$0xff]
    %559 = vset.pattern.permute.xlu0 0
    %560 = vperm.xlu0 %559, %v557
    %v561 = vpop.permute.xlu0 %560
    %v563 = vadd.f32 %v554, %v561
    %v564 = vadd.f32 %v555, %v561
    %v565 = vmul.f32 %v521, %v543
    %v566 = vmul.f32 %v522, %v544
    %s567 = scalar_lea.vmem %s1, 104
    %v568 = vld [vmem:[%s567] sm:$0xff]
    %570 = vset.pattern.permute.xlu0 0
    %571 = vperm.xlu0 %570, %v568
    %v572 = vpop.permute.xlu0 %571
    %v574 = vmul.f32 %v565, %v572
    %v575 = vmul.f32 %v566, %v572
    %s576 = scalar_lea.vmem %s1, 136
    %v577 = vld [vmem:[%s576] sm:$0xff]
    %579 = vset.pattern.permute.xlu0 0
    %580 = vperm.xlu0 %579, %v577
    %v581 = vpop.permute.xlu0 %580
    %v583 = vadd.f32 %v574, %v581
    %v584 = vadd.f32 %v575, %v581
    %v585 = vmul.f32 %v527, %v543
    %v586 = vmul.f32 %v528, %v544
    %s587 = scalar_lea.vmem %s1, 112
    %v588 = vld [vmem:[%s587] sm:$0xff]
    %590 = vset.pattern.permute.xlu0 0
    %591 = vperm.xlu0 %590, %v588
    %v592 = vpop.permute.xlu0 %591
    %v594 = vmul.f32 %v585, %v592
    %v595 = vmul.f32 %v586, %v592
    %s596 = scalar_lea.vmem %s1, 144
    %v597 = vld [vmem:[%s596] sm:$0xff]
    %599 = vset.pattern.permute.xlu0 0
    %600 = vperm.xlu0 %599, %v597
    %v601 = vpop.permute.xlu0 %600
    %v603 = vadd.f32 %v594, %v601
    %v604 = vadd.f32 %v595, %v601
    %v605 = vmul.f32 %v533, %v543
    %v606 = vmul.f32 %v534, %v544
    %s607 = scalar_lea.vmem %s1, 120
    %v608 = vld [vmem:[%s607] sm:$0xff]
    %610 = vset.pattern.permute.xlu0 0
    %611 = vperm.xlu0 %610, %v608
    %v612 = vpop.permute.xlu0 %611
    %v614 = vmul.f32 %v605, %v612
    %v615 = vmul.f32 %v606, %v612
    %s616 = scalar_lea.vmem %s1, 152
    %v617 = vld [vmem:[%s616] sm:$0xff]
    %619 = vset.pattern.permute.xlu0 0
    %620 = vperm.xlu0 %619, %v617
    %v621 = vpop.permute.xlu0 %620
    %v623 = vadd.f32 %v614, %v621
    %v624 = vadd.f32 %v615, %v621
    %v625 = vpack.c.bf16 %v563, %v563
    %v626 = vpack.c.bf16 %v564, %v564
    %v627 = vpack.c.bf16 %v583, %v583
    %v628 = vpack.c.bf16 %v584, %v584
    %v629 = vpack.c.bf16 %v603, %v603
    %v630 = vpack.c.bf16 %v604, %v604
    %v631 = vpack.c.bf16 %v623, %v623
    %v632 = vpack.c.bf16 %v624, %v624
    %v633 = vld [vmem:[%s2] sm:$0xf]
    %v634 = vld [vmem:[%s2 + $0x4] sm:$0xf]
    %v637 = vunpack.c.l.b16 %v633
    %v638 = vunpack.c.l.b16 %v634
    %v639 = vpack.c.b16 %v638, %v637
    %vm640 = vcmask 64512
    %v642 = vsel %vm640, %v639, 0
    %vm644 = vcmask 1043456
    %v646 = vsel %vm644, %v625, 0
    %v649 = vsel %vm644, %v626, 0
    %v652 = vsel %vm644, %v627, 0
    %v655 = vsel %vm644, %v628, 0
    %v658 = vsel %vm644, %v629, 0
    %v661 = vsel %vm644, %v630, 0
    %v664 = vsel %vm644, %v631, 0
    %v667 = vsel %vm644, %v632, 0
    %669 = vmatprep.subr.bf16.mxu0 0
    %670 = vmatpush1.bf16.msra.mxu0 0
    %671 = vmatprep.subr.bf16.mxu0 0
    %672 = vmatpush1.bf16.msra.mxu0 0
    %673 = vmatprep.subr.bf16.mxu0 0
    %674 = vmatpush1.bf16.msra.mxu0 0
    %675 = vmatprep.subr.bf16.mxu0 0
    %676 = vmatpush1.bf16.msra.mxu0 0
    %677 = vmatprep.subr.bf16.mxu0 0
    %678 = vmatpush1.bf16.msra.mxu0 0
    %679 = vmatprep.subr.bf16.mxu0 0
    %680 = vmatpush1.bf16.msra.mxu0 0
    %681 = vmatprep.subr.bf16.mxu0 0
    %682 = vmatpush1.bf16.msra.mxu0 0
    %683 = vmatprep.subr.bf16.mxu0 %v649
    %684 = vmatpush1.bf16.msra.mxu0 %v646
    %685 = vmatprep.subr.bf16.mxu0 0
    %686 = vmatpush2.bf16.msra.mxu0 0
    %687 = vmatprep.subr.bf16.mxu0 0
    %688 = vmatpush2.bf16.msra.mxu0 0
    %689 = vmatprep.subr.bf16.mxu0 0
    %690 = vmatpush2.bf16.msra.mxu0 0
    %691 = vmatprep.subr.bf16.mxu0 0
    %692 = vmatpush2.bf16.msra.mxu0 0
    %693 = vmatprep.subr.bf16.mxu0 0
    %694 = vmatpush2.bf16.msra.mxu0 0
    %695 = vmatprep.subr.bf16.mxu0 0
    %696 = vmatpush2.bf16.msra.mxu0 0
    %697 = vmatprep.subr.bf16.mxu0 0
    %698 = vmatpush2.bf16.msra.mxu0 0
    %699 = vmatprep.subr.bf16.mxu0 0
    %700 = vmatpush2.bf16.msra.mxu0 0
    %701 = vmatprep.mubr.bf16.mxu0 0
    %702 = vmatmul.mubr.bf16.gmra.mxu0 %v642
    %v703 = vpop.f32.mrf.mxu0
    %v704 = vadd.f32 0.0, %v703
    %v705 = vpop.f32.mrf.mxu0
    %v706 = vadd.f32 0.0, %v705
    %v707 = vpop.f32.mrf.mxu0
    %v708 = vadd.f32 0.0, %v707
    %v709 = vpop.f32.mrf.mxu0
    %v710 = vadd.f32 0.0, %v709
    %711 = vdwg.mxu0
    %712 = vmatprep.subr.bf16.mxu0 0
    %713 = vmatpush1.bf16.msra.mxu0 0
    %714 = vmatprep.subr.bf16.mxu0 0
    %715 = vmatpush1.bf16.msra.mxu0 0
    %716 = vmatprep.subr.bf16.mxu0 0
    %717 = vmatpush1.bf16.msra.mxu0 0
    %718 = vmatprep.subr.bf16.mxu0 0
    %719 = vmatpush1.bf16.msra.mxu0 0
    %720 = vmatprep.subr.bf16.mxu0 0
    %721 = vmatpush1.bf16.msra.mxu0 0
    %722 = vmatprep.subr.bf16.mxu0 0
    %723 = vmatpush1.bf16.msra.mxu0 0
    %724 = vmatprep.subr.bf16.mxu0 0
    %725 = vmatpush1.bf16.msra.mxu0 0
    %726 = vmatprep.subr.bf16.mxu0 %v655
    %727 = vmatpush1.bf16.msra.mxu0 %v652
    %728 = vmatprep.subr.bf16.mxu0 0
    %729 = vmatpush2.bf16.msra.mxu0 0
    %730 = vmatprep.subr.bf16.mxu0 0
    %731 = vmatpush2.bf16.msra.mxu0 0
    %732 = vmatprep.subr.bf16.mxu0 0
    %733 = vmatpush2.bf16.msra.mxu0 0
    %734 = vmatprep.subr.bf16.mxu0 0
    %735 = vmatpush2.bf16.msra.mxu0 0
    %736 = vmatprep.subr.bf16.mxu0 0
    %737 = vmatpush2.bf16.msra.mxu0 0
    %738 = vmatprep.subr.bf16.mxu0 0
    %739 = vmatpush2.bf16.msra.mxu0 0
    %740 = vmatprep.subr.bf16.mxu0 0
    %741 = vmatpush2.bf16.msra.mxu0 0
    %742 = vmatprep.subr.bf16.mxu0 0
    %743 = vmatpush2.bf16.msra.mxu0 0
    %744 = vmatprep.mubr.bf16.mxu0 0
    %745 = vmatmul.mubr.bf16.gmra.mxu0 %v642
    %v746 = vpop.f32.mrf.mxu0
    %v747 = vadd.f32 0.0, %v746
    %v748 = vpop.f32.mrf.mxu0
    %v749 = vadd.f32 0.0, %v748
    %v750 = vpop.f32.mrf.mxu0
    %v751 = vadd.f32 0.0, %v750
    %v752 = vpop.f32.mrf.mxu0
    %v753 = vadd.f32 0.0, %v752
    %754 = vdwg.mxu0
    %755 = vmatprep.subr.bf16.mxu0 0
    %756 = vmatpush1.bf16.msra.mxu0 0
    %757 = vmatprep.subr.bf16.mxu0 0
    %758 = vmatpush1.bf16.msra.mxu0 0
    %759 = vmatprep.subr.bf16.mxu0 0
    %760 = vmatpush1.bf16.msra.mxu0 0
    %761 = vmatprep.subr.bf16.mxu0 0
    %762 = vmatpush1.bf16.msra.mxu0 0
    %763 = vmatprep.subr.bf16.mxu0 0
    %764 = vmatpush1.bf16.msra.mxu0 0
    %765 = vmatprep.subr.bf16.mxu0 0
    %766 = vmatpush1.bf16.msra.mxu0 0
    %767 = vmatprep.subr.bf16.mxu0 0
    %768 = vmatpush1.bf16.msra.mxu0 0
    %769 = vmatprep.subr.bf16.mxu0 %v661
    %770 = vmatpush1.bf16.msra.mxu0 %v658
    %771 = vmatprep.subr.bf16.mxu0 0
    %772 = vmatpush2.bf16.msra.mxu0 0
    %773 = vmatprep.subr.bf16.mxu0 0
    %774 = vmatpush2.bf16.msra.mxu0 0
    %775 = vmatprep.subr.bf16.mxu0 0
    %776 = vmatpush2.bf16.msra.mxu0 0
    %777 = vmatprep.subr.bf16.mxu0 0
    %778 = vmatpush2.bf16.msra.mxu0 0
    %779 = vmatprep.subr.bf16.mxu0 0
    %780 = vmatpush2.bf16.msra.mxu0 0
    %781 = vmatprep.subr.bf16.mxu0 0
    %782 = vmatpush2.bf16.msra.mxu0 0
    %783 = vmatprep.subr.bf16.mxu0 0
    %784 = vmatpush2.bf16.msra.mxu0 0
    %785 = vmatprep.subr.bf16.mxu0 0
    %786 = vmatpush2.bf16.msra.mxu0 0
    %787 = vmatprep.mubr.bf16.mxu0 0
    %788 = vmatmul.mubr.bf16.gmra.mxu0 %v642
    %v789 = vpop.f32.mrf.mxu0
    %v790 = vadd.f32 0.0, %v789
    %v791 = vpop.f32.mrf.mxu0
    %v792 = vadd.f32 0.0, %v791
    %v793 = vpop.f32.mrf.mxu0
    %v794 = vadd.f32 0.0, %v793
    %v795 = vpop.f32.mrf.mxu0
    %v796 = vadd.f32 0.0, %v795
    %797 = vdwg.mxu0
    %798 = vmatprep.subr.bf16.mxu0 0
    %799 = vmatpush1.bf16.msra.mxu0 0
    %800 = vmatprep.subr.bf16.mxu0 0
    %801 = vmatpush1.bf16.msra.mxu0 0
    %802 = vmatprep.subr.bf16.mxu0 0
    %803 = vmatpush1.bf16.msra.mxu0 0
    %804 = vmatprep.subr.bf16.mxu0 0
    %805 = vmatpush1.bf16.msra.mxu0 0
    %806 = vmatprep.subr.bf16.mxu0 0
    %807 = vmatpush1.bf16.msra.mxu0 0
    %808 = vmatprep.subr.bf16.mxu0 0
    %809 = vmatpush1.bf16.msra.mxu0 0
    %810 = vmatprep.subr.bf16.mxu0 0
    %811 = vmatpush1.bf16.msra.mxu0 0
    %812 = vmatprep.subr.bf16.mxu0 %v667
    %813 = vmatpush1.bf16.msra.mxu0 %v664
    %814 = vmatprep.subr.bf16.mxu0 0
    %815 = vmatpush2.bf16.msra.mxu0 0
    %816 = vmatprep.subr.bf16.mxu0 0
    %817 = vmatpush2.bf16.msra.mxu0 0
    %818 = vmatprep.subr.bf16.mxu0 0
    %819 = vmatpush2.bf16.msra.mxu0 0
    %820 = vmatprep.subr.bf16.mxu0 0
    %821 = vmatpush2.bf16.msra.mxu0 0
    %822 = vmatprep.subr.bf16.mxu0 0
    %823 = vmatpush2.bf16.msra.mxu0 0
    %824 = vmatprep.subr.bf16.mxu0 0
    %825 = vmatpush2.bf16.msra.mxu0 0
    %826 = vmatprep.subr.bf16.mxu0 0
    %827 = vmatpush2.bf16.msra.mxu0 0
    %828 = vmatprep.subr.bf16.mxu0 0
    %829 = vmatpush2.bf16.msra.mxu0 0
    %830 = vmatprep.mubr.bf16.mxu0 0
    %831 = vmatmul.mubr.bf16.gmra.mxu0 %v642
    %v832 = vpop.f32.mrf.mxu0
    %v833 = vadd.f32 0.0, %v832
    %v834 = vpop.f32.mrf.mxu0
    %v835 = vadd.f32 0.0, %v834
    %v836 = vpop.f32.mrf.mxu0
    %v837 = vadd.f32 0.0, %v836
    %v838 = vpop.f32.mrf.mxu0
    %v839 = vadd.f32 0.0, %v838
    %840 = vdwg.mxu0
    %v841 = vpack.c.bf16 %v708, %v704
    %v842 = vpack.c.bf16 %v710, %v706
    %v843 = vpack.c.bf16 %v751, %v747
    %v844 = vpack.c.bf16 %v753, %v749
    %v845 = vpack.c.bf16 %v794, %v790
    %v846 = vpack.c.bf16 %v796, %v792
    %v847 = vpack.c.bf16 %v837, %v833
    %v848 = vpack.c.bf16 %v839, %v835
    %v857 = vunpack.c.l.b16 %v841
    %v858 = vunpack.c.l.b16 %v842
    %v859 = vunpack.c.l.b16 %v843
    %v860 = vunpack.c.l.b16 %v844
    %v861 = vunpack.c.l.b16 %v845
    %v862 = vunpack.c.l.b16 %v846
    %v863 = vunpack.c.l.b16 %v847
    %v864 = vunpack.c.l.b16 %v848
    %v865 = vunpack.c.h.b16 %v841
    %v866 = vunpack.c.h.b16 %v842
    %v867 = vunpack.c.h.b16 %v843
    %v868 = vunpack.c.h.b16 %v844
    %v869 = vunpack.c.h.b16 %v845
    %v870 = vunpack.c.h.b16 %v846
    %v871 = vunpack.c.h.b16 %v847
    %v872 = vunpack.c.h.b16 %v848
    %v873 = vpack.c.b16 %v858, %v857
    %v874 = vpack.c.b16 %v860, %v859
    %v875 = vpack.c.b16 %v862, %v861
    %v876 = vpack.c.b16 %v864, %v863
    %v877 = vpack.c.b16 %v866, %v865
    %v878 = vpack.c.b16 %v868, %v867
    %v879 = vpack.c.b16 %v870, %v869
    %v880 = vpack.c.b16 %v872, %v871
    %889 = vst [vmem:[#allocation2] sm:$0xff] %v873
    %890 = vst [vmem:[#allocation2 + $0x8] sm:$0xff] %v874
    %891 = vst [vmem:[#allocation2 + $0x10] sm:$0xff] %v875
    %892 = vst [vmem:[#allocation2 + $0x18] sm:$0xff] %v876
    %893 = vst [vmem:[#allocation2 + $0x20] sm:$0xff] %v877
    %894 = vst [vmem:[#allocation2 + $0x28] sm:$0xff] %v878
    %895 = vst [vmem:[#allocation2 + $0x30] sm:$0xff] %v879
    %896 = vst [vmem:[#allocation2 + $0x38] sm:$0xff] %v880
    // Predicated region
    $region14: #{tpu_custom_call.1} parent=1 // pred_check
      _
    $region15: #{tpu_custom_call.1} parent=1 // pred_check_branch
      %898 = sbr.rel (0) target = $region17
    $region16: #{tpu_custom_call.1} parent=1 // pred_region
      %s900 = ssub.s32 1024, 1024
      %901 = vsyncadd [#allocation3], %s900
      %s902 = sshll.u32 [#allocation2], 4
      %s903 = int_to_ptr.vmem [resolvable:$true] %s902
      %908 = dma.vmem_to_hbm [thread:$0]  %s903, 1024, %s3, [#allocation3], 512, 512, 32
    $region17: #{tpu_custom_call.1} parent=1 // pred_fallthru
      _
    // Predicated region
    $region18: #{tpu_custom_call.1} parent=1 // pred_check
      _
    $region19: #{tpu_custom_call.1} parent=1 // pred_check_branch
      %910 = sbr.rel (0) target = $region21
    $region20: #{tpu_custom_call.1} parent=1 // pred_region
      %911 = dma.done [#allocation3], 1024
    $region21: #{tpu_custom_call.1} parent=1 // pred_fallthru
      _
    %912 = vsyncpa [#allocation3], 1

</llo_original>
